<compile_context>
chip_gen: v7x
topology: tpu7x:2x2x1
jax: 0.10.0
libtpu: 0.0.40
codegen_flags: <defaults>
</compile_context>

<pallas_src>
import functools

import jax
import jax.numpy as jnp
from jax.experimental import pallas as pl
from jax.experimental.pallas import tpu as pltpu

EPS = 1e-5
NEG_SLOPE = 0.01
LANE = 128


def _round_up(x, m):
    return ((x + m - 1) // m) * m


# ----------------------------- fused Pallas kernel -----------------------------

def _bn_lrelu(m, gamma, beta, inv_n):
    # BatchNorm1d (training-mode batch stats, biased variance, eps=1e-5) + leaky_relu(0.01).
    # Single axis-0 (XLU) pass: E[x], E[x^2].
    mu = jnp.sum(m, axis=0, keepdims=True) * inv_n
    ex2 = jnp.sum(m * m, axis=0, keepdims=True) * inv_n
    var = jnp.maximum(ex2 - mu * mu, 0.0)
    y = gamma * ((m - mu) * jax.lax.rsqrt(var + EPS)) + beta
    return jnp.where(y >= 0, y, NEG_SLOPE * y)


def fused_gnn_kernel(hidden, num_blocks,
                     flow_x_ref,            # (NF, FP)           bf16
                     a_all_ref,             # (2*NT, NT)         bf16  4 relations stacked
                     wc_ref, bc_ref,        # (FP, HP) bf16 , (1, HP) f32
                     wbig_ref,              # (NB, 3*HP, 2*HP)   bf16  fused SAGE weights
                     gamma_ref, beta_ref,   # (NB, 1, HP)        f32
                     wro_ref, bro_ref,      # (HP, CP) bf16 , (1, CP) f32
                     xflow_ref, xhost_ref, logits_ref):   # f32 outputs
    nf = xflow_ref.shape[0]
    nh = xhost_ref.shape[0]
    nt = nf + nh
    hp = wc_ref.shape[1]

    # flow_feat_compressor:  x_flow = flow_x @ Wc^T + bc
    x_flow = (jnp.dot(flow_x_ref[...], wc_ref[...],
                      preferred_element_type=jnp.float32) + bc_ref[...])
    # x_host = ones(n_host, hidden); zero in padded lanes >= hidden
    col = jax.lax.broadcasted_iota(jnp.int32, (nh, hp), 1)
    x_host = (col < hidden).astype(jnp.float32)

    inv_nf = 1.0 / nf
    inv_nh = 1.0 / nh

    # num_blocks is small & static -> unrolled; activations never leave the core.
    for b in range(num_blocks):
        xcat = jnp.concatenate([x_flow, x_host], axis=0).astype(jnp.bfloat16)    # (NT, HP)

        # All four scatter-mean aggregations (sends, rev_sends, precedes, reaches)
        # as ONE row-normalized dense-adjacency matmul (MXU, f32 accumulate).
        agg = jnp.dot(a_all_ref[...], xcat, preferred_element_type=jnp.float32)  # (2NT, HP)

        # Per dst-stacked row: [relation-0 aggregate | relation-1 aggregate | x_dst]
        big_in = jnp.concatenate(
            [agg[:nt].astype(jnp.bfloat16),
             agg[nt:].astype(jnp.bfloat16),
             xcat], axis=1)                                                       # (NT, 3HP)

        # One matmul applies both lin_l's and the (pre-summed) lin_r per dst type.
        # Flow rows read column block [0:HP], host rows read [HP:2HP]; the 0.5
        # HeteroConv-mean factor is baked into wbig; lin_l biases are omitted
        # (constant shift exactly removed by the BatchNorm below).
        out = jnp.dot(big_in, wbig_ref[b], preferred_element_type=jnp.float32)    # (NT, 2HP)

        gamma = gamma_ref[b]
        beta = beta_ref[b]
        x_flow = _bn_lrelu(out[:nf, :hp], gamma, beta, inv_nf)      # shared BN module,
        x_host = _bn_lrelu(out[nf:, hp:2 * hp], gamma, beta, inv_nh)  # per-call batch stats

    # readout:  logits = x_flow @ Wro^T + bro
    logits = (jnp.dot(x_flow.astype(jnp.bfloat16), wro_ref[...],
                      preferred_element_type=jnp.float32) + bro_ref[...])

    xflow_ref[...] = x_flow
    xhost_ref[...] = x_host
    logits_ref[...] = logits


# ----------------------------- parameter / graph packing -----------------------------

def _pad2(x, r, c):
    return jnp.zeros((r, c), x.dtype).at[: x.shape[0], : x.shape[1]].set(x)


def dense_mean_adj(edge_index, n_src, n_dst):
    """edge_index: int32 [2, E] (row0=src, row1=dst).
    A[d, s] = (#edges s->d) / in_degree(d); zero rows for dst nodes with no edges."""
    src, dst = edge_index[0], edge_index[1]
    counts = jnp.zeros((n_dst, n_src), jnp.float32).at[dst, src].add(1.0)
    deg = counts.sum(axis=1, keepdims=True)
    return jnp.where(deg > 0, counts / jnp.maximum(deg, 1.0), 0.0)


def build_stacked_adjacency(adjs, n_flow, n_host):
    """One matrix for all four relations, acting on xcat = [flow (0:NF) | host (NF:NT)].
    Row layout (dst-stacked, two relation slots):
        [0      : NF   ]  sends     host -> flow
        [NF     : NT   ]  rev_sends flow -> host
        [NT     : NT+NF]  precedes  flow -> flow
        [NT+NF  : 2*NT ]  reaches   flow -> host
    """
    nt = n_flow + n_host
    a = jnp.zeros((2 * nt, nt), jnp.float32)
    a = a.at[:n_flow, n_flow:].set(adjs["sends"])
    a = a.at[n_flow:nt, :n_flow].set(adjs["rev_sends"])
    a = a.at[nt:nt + n_flow, :n_flow].set(adjs["precedes"])
    a = a.at[nt + n_flow:, :n_flow].set(adjs["reaches"])
    return a


def init_params(key, num_flow_feat, hidden, num_classes, num_blocks):
    def lin(k, fin, fout, bias=True):
        kw, kb = jax.random.split(k)
        wt = 0.1 * jax.random.normal(kw, (fin, fout), jnp.float32)  # stored as W^T
        b = (0.1 * jax.random.normal(kb, (1, fout), jnp.float32)
             if bias else jnp.zeros((1, fout), jnp.float32))
        return wt, b

    keys = jax.random.split(key, 2 + num_blocks)
    params = {}
    params["compressor_wt"], params["compressor_b"] = lin(keys[0], num_flow_feat, hidden)
    params["readout_wt"], params["readout_b"] = lin(keys[1], hidden, num_classes)

    rel_names = ("sends", "rev_sends", "precedes", "reaches")
    blocks = []
    for bi in range(num_blocks):
        bkeys = jax.random.split(keys[2 + bi], 2 * len(rel_names))
        blk = {}
        for ri, rel in enumerate(rel_names):
            wlt, bl = lin(bkeys[2 * ri], hidden, hidden, bias=True)      # lin_l (bias)
            wrt, _ = lin(bkeys[2 * ri + 1], hidden, hidden, bias=False)  # lin_r (no bias)
            blk[rel] = (wlt, bl, wrt)
        blk["bn_gamma"] = jnp.ones((1, hidden), jnp.float32)   # BatchNorm1d defaults
        blk["bn_beta"] = jnp.zeros((1, hidden), jnp.float32)
        blocks.append(blk)
    params["blocks"] = blocks
    return params


def pack_params(params, *, hidden, num_flow_feat, num_classes):
    hp = _round_up(hidden, LANE)
    fp = _round_up(num_flow_feat, LANE)
    cp = _round_up(num_classes, LANE)

    packed = {
        "wc": _pad2(params["compressor_wt"], fp, hp).astype(jnp.bfloat16),
        "bc": _pad2(params["compressor_b"], 1, hp),
        "wro": _pad2(params["readout_wt"], hp, cp).astype(jnp.bfloat16),
        "bro": _pad2(params["readout_b"], 1, cp),
    }

    wbig, gammas, betas = [], [], []
    for blk in params["blocks"]:
        wl_s, _, wr_s = blk["sends"]       # dst=flow, relation slot 0
        wl_p, _, wr_p = blk["precedes"]    # dst=flow, relation slot 1
        wl_r, _, wr_r = blk["rev_sends"]   # dst=host, relation slot 0
        wl_h, _, wr_h = blk["reaches"]     # dst=host, relation slot 1
        # Column block 0 serves flow rows, block 1 serves host rows.
        # Contraction layout: [rel-0 lin_l ; rel-1 lin_l ; summed lin_r], each HP tall.
        # 0.5 = HeteroConv(aggr='mean') folded in (exact); lin_l biases intentionally
        # dropped (exactly cancelled by the following BatchNorm mean subtraction).
        flow_col = jnp.concatenate(
            [_pad2(0.5 * wl_s, hp, hp), _pad2(0.5 * wl_p, hp, hp),
             _pad2(0.5 * (wr_s + wr_p), hp, hp)], axis=0)
        host_col = jnp.concatenate(
            [_pad2(0.5 * wl_r, hp, hp), _pad2(0.5 * wl_h, hp, hp),
             _pad2(0.5 * (wr_r + wr_h), hp, hp)], axis=0)
        wbig.append(jnp.concatenate([flow_col, host_col], axis=1))   # (3HP, 2HP)
        gammas.append(_pad2(blk["bn_gamma"], 1, hp))
        betas.append(_pad2(blk["bn_beta"], 1, hp))

    packed["wbig"] = jnp.stack(wbig).astype(jnp.bfloat16)
    packed["gamma"] = jnp.stack(gammas)
    packed["beta"] = jnp.stack(betas)
    return packed, hp, fp, cp


# ----------------------------- forward wrapper -----------------------------

@functools.partial(jax.jit, static_argnames=(
    "hidden", "num_blocks", "num_classes", "n_flow", "n_host", "hp", "fp", "cp"))
def gnn_model_forward(packed, flow_x, a_all, *, hidden, num_blocks, num_classes,
                      n_flow, n_host, hp, fp, cp):
    flow_x_p = jnp.zeros((n_flow, fp), jnp.bfloat16).at[:, : flow_x.shape[1]].set(
        flow_x.astype(jnp.bfloat16))

    vmem = pl.BlockSpec(memory_space=pltpu.MemorySpace.VMEM)
    kernel = functools.partial(fused_gnn_kernel, hidden, num_blocks)

    xf, xh, lg = pl.pallas_call(
        kernel,
        out_shape=(
            jax.ShapeDtypeStruct((n_flow, hp), jnp.float32),
            jax.ShapeDtypeStruct((n_host, hp), jnp.float32),
            jax.ShapeDtypeStruct((n_flow, cp), jnp.float32),
        ),
        in_specs=[vmem] * 9,
        out_specs=(vmem, vmem, vmem),
    )(
        flow_x_p,
        a_all.astype(jnp.bfloat16),
        packed["wc"], packed["bc"],
        packed["wbig"],
        packed["gamma"], packed["beta"],
        packed["wro"], packed["bro"],
    )

    x_dict = {"flow": xf[:, :hidden], "host": xh[:, :hidden]}
    logits = lg[:, :num_classes]
    return x_dict, logits


# ----------------------------- pure-JAX reference (PyTorch math, f32) -----------------------------

def reference_forward(params, flow_x, adjs, n_host, hidden, num_blocks):
    xf = flow_x @ params["compressor_wt"] + params["compressor_b"]
    xh = jnp.ones((n_host, hidden), jnp.float32)
    for blk in params["blocks"]:
        def sage(rel, agg, x_dst):
            wlt, bl, wrt = blk[rel]
            return agg @ wlt + bl + x_dst @ wrt
        m_flow = 0.5 * (sage("sends", adjs["sends"] @ xh, xf)
                        + sage("precedes", adjs["precedes"] @ xf, xf))
        m_host = 0.5 * (sage("rev_sends", adjs["rev_sends"] @ xf, xh)
                        + sage("reaches", adjs["reaches"] @ xf, xh))

        def bn_lrelu(m):
            mu = jnp.mean(m, axis=0, keepdims=True)
            var = jnp.var(m, axis=0, keepdims=True)     # biased, training-mode stats
            y = blk["bn_gamma"] * (m - mu) / jnp.sqrt(var + EPS) + blk["bn_beta"]
            return jnp.where(y >= 0, y, NEG_SLOPE * y)

        xf, xh = bn_lrelu(m_flow), bn_lrelu(m_host)
    logits = xf @ params["readout_wt"] + params["readout_b"]
    return xf, xh, logits


# ----------------------------- main -----------------------------

if __name__ == "__main__":
    num_conv_blocks = 2
    num_flow_feat = 12
    num_classes = 5
    hidden = 32
    n_flow = 24
    n_host = 8

    key = jax.random.PRNGKey(0)
    k_par, k_x, k_e1, k_e2, k_e3, k_e4 = jax.random.split(key, 6)

    params = init_params(k_par, num_flow_feat, hidden, num_classes, num_conv_blocks)
    packed, hp, fp, cp = pack_params(params, hidden=hidden,
                                     num_flow_feat=num_flow_feat,
                                     num_classes=num_classes)
    flow_x = jax.random.normal(k_x, (n_flow, num_flow_feat), jnp.float32)

    def rand_edges(k, n_src, n_dst, n_edges):
        ks, kd = jax.random.split(k)
        src = jax.random.randint(ks, (n_edges,), 0, n_src, jnp.int32)
        dst = jax.random.randint(kd, (n_edges,), 0, n_dst, jnp.int32)
        return jnp.stack([src, dst], axis=0)

    edge_index = {
        "sends": rand_edges(k_e1, n_host, n_flow, 48),      # host -> flow
        "rev_sends": rand_edges(k_e2, n_flow, n_host, 48),  # flow -> host
        "precedes": rand_edges(k_e3, n_flow, n_flow, 40),   # flow -> flow
        "reaches": rand_edges(k_e4, n_flow, n_host, 40),    # flow -> host
    }
    adjs = {
        "sends": dense_mean_adj(edge_index["sends"], n_host, n_flow),
        "rev_sends": dense_mean_adj(edge_index["rev_sends"], n_flow, n_host),
        "precedes": dense_mean_adj(edge_index["precedes"], n_flow, n_flow),
        "reaches": dense_mean_adj(edge_index["reaches"], n_flow, n_host),
    }
    a_all = build_stacked_adjacency(adjs, n_flow, n_host)

    x_dict, logits = gnn_model_forward(
        packed, flow_x, a_all,
        hidden=hidden, num_blocks=num_conv_blocks, num_classes=num_classes,
        n_flow=n_flow, n_host=n_host, hp=hp, fp=fp, cp=cp)
    jax.block_until_ready((x_dict, logits))

    assert x_dict["flow"].shape == (n_flow, hidden)
    assert x_dict["host"].shape == (n_host, hidden)
    assert logits.shape == (n_flow, num_classes)
    assert bool(jnp.all(jnp.isfinite(x_dict["flow"])))
    assert bool(jnp.all(jnp.isfinite(x_dict["host"])))
    assert bool(jnp.all(jnp.isfinite(logits)))

    # Correctness vs. an f32 reference of the exact PyTorch math (with lin_l biases
    # and the explicit 0.5 HeteroConv mean).  Tolerance covers bf16 MXU operands
    # propagated through two BatchNorm normalizations.
    xf_ref, xh_ref, lg_ref = reference_forward(
        params, flow_x, adjs, n_host, hidden, num_conv_blocks)
    tol = 0.35
    d_f = float(jnp.max(jnp.abs(x_dict["flow"] - xf_ref)))
    d_h = float(jnp.max(jnp.abs(x_dict["host"] - xh_ref)))
    d_l = float(jnp.max(jnp.abs(logits - lg_ref)))
    assert d_f < tol, f"flow mismatch: {d_f}"
    assert d_h < tol, f"host mismatch: {d_h}"
    assert d_l < tol, f"logits mismatch: {d_l}"

    print("KERNEL_OK")
</pallas_src>

<mosaic_0001>
module attributes {stable_mosaic.version = 11 : i64} {
  func.func @fused_gnn_kernel(%arg0: memref<24x128xbf16, #tpu.memory_space<vmem>>, %arg1: memref<64x32xbf16, #tpu.memory_space<vmem>>, %arg2: memref<128x128xbf16, #tpu.memory_space<vmem>>, %arg3: memref<1x128xf32, #tpu.memory_space<vmem>>, %arg4: memref<2x384x256xbf16, #tpu.memory_space<vmem>>, %arg5: memref<2x1x128xf32, #tpu.memory_space<vmem>>, %arg6: memref<2x1x128xf32, #tpu.memory_space<vmem>>, %arg7: memref<128x128xbf16, #tpu.memory_space<vmem>>, %arg8: memref<1x128xf32, #tpu.memory_space<vmem>>, %arg9: memref<24x128xf32, #tpu.memory_space<vmem>>, %arg10: memref<8x128xf32, #tpu.memory_space<vmem>>, %arg11: memref<24x128xf32, #tpu.memory_space<vmem>>) attributes {dimension_semantics = [], scalar_prefetch = 0 : i64, scratch_operands = 0 : i64, tpu.core_type = #tpu.core_type<tc>} {
    %c0 = arith.constant 0 : index
    %c0_0 = arith.constant 0 : index
    %0 = vector.load %arg0[%c0, %c0_0] : memref<24x128xbf16, #tpu.memory_space<vmem>>, vector<24x128xbf16>
    %c0_1 = arith.constant 0 : index
    %c0_2 = arith.constant 0 : index
    %1 = vector.load %arg2[%c0_1, %c0_2] : memref<128x128xbf16, #tpu.memory_space<vmem>>, vector<128x128xbf16>
    %cst = arith.constant dense<0.000000e+00> : vector<24x128xf32>
    %2 = tpu.matmul %0, %1, %cst {dimension_numbers = #tpu.dot_dimension_numbers<[1], [0], [0], [1], [0, 0, 1, 1], [], []>} : vector<24x128xbf16>, vector<128x128xbf16>, vector<24x128xf32> -> vector<24x128xf32>
    %c0_3 = arith.constant 0 : index
    %c0_4 = arith.constant 0 : index
    %3 = vector.load %arg3[%c0_3, %c0_4] : memref<1x128xf32, #tpu.memory_space<vmem>>, vector<1x128xf32>
    %4 = vector.broadcast %3 : vector<1x128xf32> to vector<24x128xf32>
    %5 = arith.addf %2, %4 : vector<24x128xf32>
    %6 = tpu.iota {dimensions = array<i32: 1>} : vector<8x128xi32>
    %c32_i32 = arith.constant 32 : i32
    %7 = vector.broadcast %c32_i32 : i32 to vector<8x128xi32>
    %8 = arith.cmpi slt, %6, %7 : vector<8x128xi32>
    %9 = arith.extui %8 : vector<8x128xi1> to vector<8x128xi32>
    %10 = arith.sitofp %9 : vector<8x128xi32> to vector<8x128xf32>
    %11 = tpu.concatenate %5, %10 in 0 : vector<24x128xf32>, vector<8x128xf32> -> vector<32x128xf32>
    %12 = arith.truncf %11 : vector<32x128xf32> to vector<32x128xbf16>
    %c0_5 = arith.constant 0 : index
    %c0_6 = arith.constant 0 : index
    %13 = vector.load %arg1[%c0_5, %c0_6] : memref<64x32xbf16, #tpu.memory_space<vmem>>, vector<64x32xbf16>
    %cst_7 = arith.constant dense<0.000000e+00> : vector<64x128xf32>
    %14 = tpu.matmul %13, %12, %cst_7 {dimension_numbers = #tpu.dot_dimension_numbers<[1], [0], [0], [1], [0, 0, 1, 1], [], []>} : vector<64x32xbf16>, vector<32x128xbf16>, vector<64x128xf32> -> vector<64x128xf32>
    %15 = vector.extract_strided_slice %14 {offsets = [0, 0], sizes = [32, 128], strides = [1, 1]} : vector<64x128xf32> to vector<32x128xf32>
    %16 = arith.truncf %15 : vector<32x128xf32> to vector<32x128xbf16>
    %17 = vector.extract_strided_slice %14 {offsets = [32, 0], sizes = [32, 128], strides = [1, 1]} : vector<64x128xf32> to vector<32x128xf32>
    %18 = arith.truncf %17 : vector<32x128xf32> to vector<32x128xbf16>
    %19 = tpu.concatenate %16, %18, %12 in 1 : vector<32x128xbf16>, vector<32x128xbf16>, vector<32x128xbf16> -> vector<32x384xbf16>
    %c0_8 = arith.constant 0 : index
    %c0_9 = arith.constant 0 : index
    %c0_10 = arith.constant 0 : index
    %20 = vector.load %arg4[%c0_8, %c0_9, %c0_10] : memref<2x384x256xbf16, #tpu.memory_space<vmem>>, vector<1x384x256xbf16>
    %21 = vector.shape_cast %20 : vector<1x384x256xbf16> to vector<384x256xbf16>
    %cst_11 = arith.constant dense<0.000000e+00> : vector<32x256xf32>
    %22 = tpu.matmul %19, %21, %cst_11 {dimension_numbers = #tpu.dot_dimension_numbers<[1], [0], [0], [1], [0, 0, 1, 1], [], []>} : vector<32x384xbf16>, vector<384x256xbf16>, vector<32x256xf32> -> vector<32x256xf32>
    %c0_12 = arith.constant 0 : index
    %c0_13 = arith.constant 0 : index
    %c0_14 = arith.constant 0 : index
    %23 = vector.load %arg5[%c0_12, %c0_13, %c0_14] : memref<2x1x128xf32, #tpu.memory_space<vmem>>, vector<1x1x128xf32>
    %24 = vector.shape_cast %23 : vector<1x1x128xf32> to vector<1x128xf32>
    %c0_15 = arith.constant 0 : index
    %c0_16 = arith.constant 0 : index
    %c0_17 = arith.constant 0 : index
    %25 = vector.load %arg6[%c0_15, %c0_16, %c0_17] : memref<2x1x128xf32, #tpu.memory_space<vmem>>, vector<1x1x128xf32>
    %26 = vector.shape_cast %25 : vector<1x1x128xf32> to vector<1x128xf32>
    %27 = vector.extract_strided_slice %22 {offsets = [0, 0], sizes = [24, 128], strides = [1, 1]} : vector<32x256xf32> to vector<24x128xf32>
    %cst_18 = arith.constant dense<0.000000e+00> : vector<128xf32>
    %28 = vector.multi_reduction <add>, %27, %cst_18 [0] : vector<24x128xf32> to vector<128xf32>
    %29 = vector.shape_cast %28 : vector<128xf32> to vector<1x128xf32>
    %cst_19 = arith.constant 0.0416666679 : f32
    %30 = vector.broadcast %cst_19 : f32 to vector<1x128xf32>
    %31 = arith.mulf %29, %30 : vector<1x128xf32>
    %32 = arith.mulf %27, %27 : vector<24x128xf32>
    %cst_20 = arith.constant dense<0.000000e+00> : vector<128xf32>
    %33 = vector.multi_reduction <add>, %32, %cst_20 [0] : vector<24x128xf32> to vector<128xf32>
    %34 = vector.shape_cast %33 : vector<128xf32> to vector<1x128xf32>
    %cst_21 = arith.constant 0.0416666679 : f32
    %35 = vector.broadcast %cst_21 : f32 to vector<1x128xf32>
    %36 = arith.mulf %34, %35 : vector<1x128xf32>
    %37 = arith.mulf %31, %31 : vector<1x128xf32>
    %38 = arith.subf %36, %37 : vector<1x128xf32>
    %cst_22 = arith.constant 0.000000e+00 : f32
    %39 = vector.broadcast %cst_22 : f32 to vector<1x128xf32>
    %40 = arith.maximumf %38, %39 : vector<1x128xf32>
    %41 = vector.broadcast %31 : vector<1x128xf32> to vector<24x128xf32>
    %42 = arith.subf %27, %41 : vector<24x128xf32>
    %cst_23 = arith.constant 9.99999974E-6 : f32
    %43 = vector.broadcast %cst_23 : f32 to vector<1x128xf32>
    %44 = arith.addf %40, %43 : vector<1x128xf32>
    %45 = math.rsqrt %44 : vector<1x128xf32>
    %46 = vector.broadcast %45 : vector<1x128xf32> to vector<24x128xf32>
    %47 = arith.mulf %42, %46 : vector<24x128xf32>
    %48 = vector.broadcast %24 : vector<1x128xf32> to vector<24x128xf32>
    %49 = arith.mulf %48, %47 : vector<24x128xf32>
    %50 = vector.broadcast %26 : vector<1x128xf32> to vector<24x128xf32>
    %51 = arith.addf %49, %50 : vector<24x128xf32>
    %cst_24 = arith.constant 0.000000e+00 : f32
    %52 = vector.broadcast %cst_24 : f32 to vector<24x128xf32>
    %53 = arith.cmpf oge, %51, %52 : vector<24x128xf32>
    %cst_25 = arith.constant 0.00999999977 : f32
    %54 = vector.broadcast %cst_25 : f32 to vector<24x128xf32>
    %55 = arith.mulf %54, %51 : vector<24x128xf32>
    %56 = arith.select %53, %51, %55 : vector<24x128xi1>, vector<24x128xf32>
    %57 = vector.extract_strided_slice %22 {offsets = [24, 128], sizes = [8, 128], strides = [1, 1]} : vector<32x256xf32> to vector<8x128xf32>
    %cst_26 = arith.constant dense<0.000000e+00> : vector<128xf32>
    %58 = vector.multi_reduction <add>, %57, %cst_26 [0] : vector<8x128xf32> to vector<128xf32>
    %59 = vector.shape_cast %58 : vector<128xf32> to vector<1x128xf32>
    %cst_27 = arith.constant 1.250000e-01 : f32
    %60 = vector.broadcast %cst_27 : f32 to vector<1x128xf32>
    %61 = arith.mulf %59, %60 : vector<1x128xf32>
    %62 = arith.mulf %57, %57 : vector<8x128xf32>
    %cst_28 = arith.constant dense<0.000000e+00> : vector<128xf32>
    %63 = vector.multi_reduction <add>, %62, %cst_28 [0] : vector<8x128xf32> to vector<128xf32>
    %64 = vector.shape_cast %63 : vector<128xf32> to vector<1x128xf32>
    %cst_29 = arith.constant 1.250000e-01 : f32
    %65 = vector.broadcast %cst_29 : f32 to vector<1x128xf32>
    %66 = arith.mulf %64, %65 : vector<1x128xf32>
    %67 = arith.mulf %61, %61 : vector<1x128xf32>
    %68 = arith.subf %66, %67 : vector<1x128xf32>
    %cst_30 = arith.constant 0.000000e+00 : f32
    %69 = vector.broadcast %cst_30 : f32 to vector<1x128xf32>
    %70 = arith.maximumf %68, %69 : vector<1x128xf32>
    %71 = vector.broadcast %61 : vector<1x128xf32> to vector<8x128xf32>
    %72 = arith.subf %57, %71 : vector<8x128xf32>
    %cst_31 = arith.constant 9.99999974E-6 : f32
    %73 = vector.broadcast %cst_31 : f32 to vector<1x128xf32>
    %74 = arith.addf %70, %73 : vector<1x128xf32>
    %75 = math.rsqrt %74 : vector<1x128xf32>
    %76 = vector.broadcast %75 : vector<1x128xf32> to vector<8x128xf32>
    %77 = arith.mulf %72, %76 : vector<8x128xf32>
    %78 = vector.broadcast %24 : vector<1x128xf32> to vector<8x128xf32>
    %79 = arith.mulf %78, %77 : vector<8x128xf32>
    %80 = vector.broadcast %26 : vector<1x128xf32> to vector<8x128xf32>
    %81 = arith.addf %79, %80 : vector<8x128xf32>
    %cst_32 = arith.constant 0.000000e+00 : f32
    %82 = vector.broadcast %cst_32 : f32 to vector<8x128xf32>
    %83 = arith.cmpf oge, %81, %82 : vector<8x128xf32>
    %cst_33 = arith.constant 0.00999999977 : f32
    %84 = vector.broadcast %cst_33 : f32 to vector<8x128xf32>
    %85 = arith.mulf %84, %81 : vector<8x128xf32>
    %86 = arith.select %83, %81, %85 : vector<8x128xi1>, vector<8x128xf32>
    %87 = tpu.concatenate %56, %86 in 0 : vector<24x128xf32>, vector<8x128xf32> -> vector<32x128xf32>
    %88 = arith.truncf %87 : vector<32x128xf32> to vector<32x128xbf16>
    %c0_34 = arith.constant 0 : index
    %c0_35 = arith.constant 0 : index
    %89 = vector.load %arg1[%c0_34, %c0_35] : memref<64x32xbf16, #tpu.memory_space<vmem>>, vector<64x32xbf16>
    %cst_36 = arith.constant dense<0.000000e+00> : vector<64x128xf32>
    %90 = tpu.matmul %89, %88, %cst_36 {dimension_numbers = #tpu.dot_dimension_numbers<[1], [0], [0], [1], [0, 0, 1, 1], [], []>} : vector<64x32xbf16>, vector<32x128xbf16>, vector<64x128xf32> -> vector<64x128xf32>
    %91 = vector.extract_strided_slice %90 {offsets = [0, 0], sizes = [32, 128], strides = [1, 1]} : vector<64x128xf32> to vector<32x128xf32>
    %92 = arith.truncf %91 : vector<32x128xf32> to vector<32x128xbf16>
    %93 = vector.extract_strided_slice %90 {offsets = [32, 0], sizes = [32, 128], strides = [1, 1]} : vector<64x128xf32> to vector<32x128xf32>
    %94 = arith.truncf %93 : vector<32x128xf32> to vector<32x128xbf16>
    %95 = tpu.concatenate %92, %94, %88 in 1 : vector<32x128xbf16>, vector<32x128xbf16>, vector<32x128xbf16> -> vector<32x384xbf16>
    %c1 = arith.constant 1 : index
    %c0_37 = arith.constant 0 : index
    %c0_38 = arith.constant 0 : index
    %96 = vector.load %arg4[%c1, %c0_37, %c0_38] : memref<2x384x256xbf16, #tpu.memory_space<vmem>>, vector<1x384x256xbf16>
    %97 = vector.shape_cast %96 : vector<1x384x256xbf16> to vector<384x256xbf16>
    %cst_39 = arith.constant dense<0.000000e+00> : vector<32x256xf32>
    %98 = tpu.matmul %95, %97, %cst_39 {dimension_numbers = #tpu.dot_dimension_numbers<[1], [0], [0], [1], [0, 0, 1, 1], [], []>} : vector<32x384xbf16>, vector<384x256xbf16>, vector<32x256xf32> -> vector<32x256xf32>
    %c1_40 = arith.constant 1 : index
    %c0_41 = arith.constant 0 : index
    %c0_42 = arith.constant 0 : index
    %99 = vector.load %arg5[%c1_40, %c0_41, %c0_42] : memref<2x1x128xf32, #tpu.memory_space<vmem>>, vector<1x1x128xf32>
    %100 = vector.shape_cast %99 : vector<1x1x128xf32> to vector<1x128xf32>
    %c1_43 = arith.constant 1 : index
    %c0_44 = arith.constant 0 : index
    %c0_45 = arith.constant 0 : index
    %101 = vector.load %arg6[%c1_43, %c0_44, %c0_45] : memref<2x1x128xf32, #tpu.memory_space<vmem>>, vector<1x1x128xf32>
    %102 = vector.shape_cast %101 : vector<1x1x128xf32> to vector<1x128xf32>
    %103 = vector.extract_strided_slice %98 {offsets = [0, 0], sizes = [24, 128], strides = [1, 1]} : vector<32x256xf32> to vector<24x128xf32>
    %cst_46 = arith.constant dense<0.000000e+00> : vector<128xf32>
    %104 = vector.multi_reduction <add>, %103, %cst_46 [0] : vector<24x128xf32> to vector<128xf32>
    %105 = vector.shape_cast %104 : vector<128xf32> to vector<1x128xf32>
    %cst_47 = arith.constant 0.0416666679 : f32
    %106 = vector.broadcast %cst_47 : f32 to vector<1x128xf32>
    %107 = arith.mulf %105, %106 : vector<1x128xf32>
    %108 = arith.mulf %103, %103 : vector<24x128xf32>
    %cst_48 = arith.constant dense<0.000000e+00> : vector<128xf32>
    %109 = vector.multi_reduction <add>, %108, %cst_48 [0] : vector<24x128xf32> to vector<128xf32>
    %110 = vector.shape_cast %109 : vector<128xf32> to vector<1x128xf32>
    %cst_49 = arith.constant 0.0416666679 : f32
    %111 = vector.broadcast %cst_49 : f32 to vector<1x128xf32>
    %112 = arith.mulf %110, %111 : vector<1x128xf32>
    %113 = arith.mulf %107, %107 : vector<1x128xf32>
    %114 = arith.subf %112, %113 : vector<1x128xf32>
    %cst_50 = arith.constant 0.000000e+00 : f32
    %115 = vector.broadcast %cst_50 : f32 to vector<1x128xf32>
    %116 = arith.maximumf %114, %115 : vector<1x128xf32>
    %117 = vector.broadcast %107 : vector<1x128xf32> to vector<24x128xf32>
    %118 = arith.subf %103, %117 : vector<24x128xf32>
    %cst_51 = arith.constant 9.99999974E-6 : f32
    %119 = vector.broadcast %cst_51 : f32 to vector<1x128xf32>
    %120 = arith.addf %116, %119 : vector<1x128xf32>
    %121 = math.rsqrt %120 : vector<1x128xf32>
    %122 = vector.broadcast %121 : vector<1x128xf32> to vector<24x128xf32>
    %123 = arith.mulf %118, %122 : vector<24x128xf32>
    %124 = vector.broadcast %100 : vector<1x128xf32> to vector<24x128xf32>
    %125 = arith.mulf %124, %123 : vector<24x128xf32>
    %126 = vector.broadcast %102 : vector<1x128xf32> to vector<24x128xf32>
    %127 = arith.addf %125, %126 : vector<24x128xf32>
    %cst_52 = arith.constant 0.000000e+00 : f32
    %128 = vector.broadcast %cst_52 : f32 to vector<24x128xf32>
    %129 = arith.cmpf oge, %127, %128 : vector<24x128xf32>
    %cst_53 = arith.constant 0.00999999977 : f32
    %130 = vector.broadcast %cst_53 : f32 to vector<24x128xf32>
    %131 = arith.mulf %130, %127 : vector<24x128xf32>
    %132 = arith.select %129, %127, %131 : vector<24x128xi1>, vector<24x128xf32>
    %133 = vector.extract_strided_slice %98 {offsets = [24, 128], sizes = [8, 128], strides = [1, 1]} : vector<32x256xf32> to vector<8x128xf32>
    %cst_54 = arith.constant dense<0.000000e+00> : vector<128xf32>
    %134 = vector.multi_reduction <add>, %133, %cst_54 [0] : vector<8x128xf32> to vector<128xf32>
    %135 = vector.shape_cast %134 : vector<128xf32> to vector<1x128xf32>
    %cst_55 = arith.constant 1.250000e-01 : f32
    %136 = vector.broadcast %cst_55 : f32 to vector<1x128xf32>
    %137 = arith.mulf %135, %136 : vector<1x128xf32>
    %138 = arith.mulf %133, %133 : vector<8x128xf32>
    %cst_56 = arith.constant dense<0.000000e+00> : vector<128xf32>
    %139 = vector.multi_reduction <add>, %138, %cst_56 [0] : vector<8x128xf32> to vector<128xf32>
    %140 = vector.shape_cast %139 : vector<128xf32> to vector<1x128xf32>
    %cst_57 = arith.constant 1.250000e-01 : f32
    %141 = vector.broadcast %cst_57 : f32 to vector<1x128xf32>
    %142 = arith.mulf %140, %141 : vector<1x128xf32>
    %143 = arith.mulf %137, %137 : vector<1x128xf32>
    %144 = arith.subf %142, %143 : vector<1x128xf32>
    %cst_58 = arith.constant 0.000000e+00 : f32
    %145 = vector.broadcast %cst_58 : f32 to vector<1x128xf32>
    %146 = arith.maximumf %144, %145 : vector<1x128xf32>
    %147 = vector.broadcast %137 : vector<1x128xf32> to vector<8x128xf32>
    %148 = arith.subf %133, %147 : vector<8x128xf32>
    %cst_59 = arith.constant 9.99999974E-6 : f32
    %149 = vector.broadcast %cst_59 : f32 to vector<1x128xf32>
    %150 = arith.addf %146, %149 : vector<1x128xf32>
    %151 = math.rsqrt %150 : vector<1x128xf32>
    %152 = vector.broadcast %151 : vector<1x128xf32> to vector<8x128xf32>
    %153 = arith.mulf %148, %152 : vector<8x128xf32>
    %154 = vector.broadcast %100 : vector<1x128xf32> to vector<8x128xf32>
    %155 = arith.mulf %154, %153 : vector<8x128xf32>
    %156 = vector.broadcast %102 : vector<1x128xf32> to vector<8x128xf32>
    %157 = arith.addf %155, %156 : vector<8x128xf32>
    %cst_60 = arith.constant 0.000000e+00 : f32
    %158 = vector.broadcast %cst_60 : f32 to vector<8x128xf32>
    %159 = arith.cmpf oge, %157, %158 : vector<8x128xf32>
    %cst_61 = arith.constant 0.00999999977 : f32
    %160 = vector.broadcast %cst_61 : f32 to vector<8x128xf32>
    %161 = arith.mulf %160, %157 : vector<8x128xf32>
    %162 = arith.select %159, %157, %161 : vector<8x128xi1>, vector<8x128xf32>
    %163 = arith.truncf %132 : vector<24x128xf32> to vector<24x128xbf16>
    %c0_62 = arith.constant 0 : index
    %c0_63 = arith.constant 0 : index
    %164 = vector.load %arg7[%c0_62, %c0_63] : memref<128x128xbf16, #tpu.memory_space<vmem>>, vector<128x128xbf16>
    %cst_64 = arith.constant dense<0.000000e+00> : vector<24x128xf32>
    %165 = tpu.matmul %163, %164, %cst_64 {dimension_numbers = #tpu.dot_dimension_numbers<[1], [0], [0], [1], [0, 0, 1, 1], [], []>} : vector<24x128xbf16>, vector<128x128xbf16>, vector<24x128xf32> -> vector<24x128xf32>
    %c0_65 = arith.constant 0 : index
    %c0_66 = arith.constant 0 : index
    %166 = vector.load %arg8[%c0_65, %c0_66] : memref<1x128xf32, #tpu.memory_space<vmem>>, vector<1x128xf32>
    %167 = vector.broadcast %166 : vector<1x128xf32> to vector<24x128xf32>
    %168 = arith.addf %165, %167 : vector<24x128xf32>
    %c0_67 = arith.constant 0 : index
    %c0_68 = arith.constant 0 : index
    %169 = vector.load %arg9[%c0_67, %c0_68] : memref<24x128xf32, #tpu.memory_space<vmem>>, vector<24x128xf32>
    tpu.vector_store %arg9[%c0_67, %c0_68], %132 {strides = array<i32>} : memref<24x128xf32, #tpu.memory_space<vmem>>, vector<24x128xf32>,
    %c0_69 = arith.constant 0 : index
    %c0_70 = arith.constant 0 : index
    %170 = vector.load %arg10[%c0_69, %c0_70] : memref<8x128xf32, #tpu.memory_space<vmem>>, vector<8x128xf32>
    tpu.vector_store %arg10[%c0_69, %c0_70], %162 {strides = array<i32>} : memref<8x128xf32, #tpu.memory_space<vmem>>, vector<8x128xf32>,
    %c0_71 = arith.constant 0 : index
    %c0_72 = arith.constant 0 : index
    %171 = vector.load %arg11[%c0_71, %c0_72] : memref<24x128xf32, #tpu.memory_space<vmem>>, vector<24x128xf32>
    tpu.vector_store %arg11[%c0_71, %c0_72], %168 {strides = array<i32>} : memref<24x128xf32, #tpu.memory_space<vmem>>, vector<24x128xf32>,
    return
  }
}

</mosaic_0001>

<llo_original>
// kernel: gnn_model_forward.1
$region0: #{gnn_model_forward.1}
  #allocation0 [shape = 'u32[]', space=smem, size = 0x4, offset = 0x4, fixed_abs, tag = 'smem constant byte address 0x4 - core index']
  #allocation1 [shape = 'u32[144,128]{1,0:T(1,128)}', space=vmem, size = 0x12000, scoped, tag = 'internal scratch']
  %s0 = inlined_call_operand.vmem [shape: bf16[24,128], index: 0, kind: input, shape index: {}]
  %s1 = inlined_call_operand.vmem [shape: bf16[64,32], index: 1, kind: input, shape index: {}]
  %s2 = inlined_call_operand.vmem [shape: bf16[128,128], index: 2, kind: input, shape index: {}]
  %s3 = inlined_call_operand.vmem [shape: f32[1,128], index: 3, kind: input, shape index: {}]
  %s4 = inlined_call_operand.hbm [shape: bf16[2,384,256], index: 4, kind: input, shape index: {}]
  %s5 = inlined_call_operand.vmem [shape: f32[2,1,128], index: 5, kind: input, shape index: {}]
  %s6 = inlined_call_operand.vmem [shape: f32[2,1,128], index: 6, kind: input, shape index: {}]
  %s7 = inlined_call_operand.vmem [shape: bf16[128,128], index: 7, kind: input, shape index: {}]
  %s8 = inlined_call_operand.vmem [shape: f32[1,128], index: 8, kind: input, shape index: {}]
  %s9 = inlined_call_operand.hbm [shape: f32[24,128], index: 9, kind: output, shape index: {0}]
  %s10 = inlined_call_operand.hbm [shape: f32[8,128], index: 10, kind: output, shape index: {1}]
  %s11 = inlined_call_operand.vmem [shape: f32[24,128], index: 11, kind: output, shape index: {2}]
  %12 = xla_tuple %s9, %s10, %s11
  %s13 = sld [smem:[#allocation0]]
  $region66: #{gnn_model_forward.1} parent=0
    _
  %s15 = ssub.s32 1, %s13
  %s16 = scalar_select 0, %s15, %s13
  $region1: #{gnn_model_forward.1} parent=0
    #allocation2 [shape = 'u8[393216]{0}', space=vmem, size = 0x60000, scoped, tag = 'input window, operand 4, single buffered']
    #allocation3 [shape = 's32[1]{0}', space=sflag, size = 0x4, scoped, tag = 'scoped memory for gnn_model_forward.1']
    #allocation4 [shape = 's32[1]{0}', space=sflag, size = 0x4, scoped, tag = 'scoped memory for gnn_model_forward.1']
    #allocation5 [shape = 'u8[12288]{0}', space=vmem, size = 0x3000, scoped, tag = 'output window, operand 0, single buffered']
    #allocation6 [shape = 'u8[4096]{0}', space=vmem, size = 0x1000, scoped, tag = 'output window, operand 1, single buffered']
    #allocation7 [shape = 's32[1]{0}', space=sflag, size = 0x4, scoped, tag = 'scoped memory for gnn_model_forward.1']
    %17 = vsyncpa [#allocation3], 0
    %18 = vsyncpa [#allocation4], 0
    %19 = vsyncpa [#allocation7], 0
    // Predicated region
    $region2: #{gnn_model_forward.1} parent=1 // pred_check
      _
    $region3: #{gnn_model_forward.1} parent=1 // pred_check_branch
      %21 = sbr.rel (0) target = $region5
    $region4: #{gnn_model_forward.1} parent=1 // pred_region
      _
    $region5: #{gnn_model_forward.1} parent=1 // pred_fallthru
      _
    // Predicated region
    $region6: #{gnn_model_forward.1} parent=1 // pred_check
      _
    $region7: #{gnn_model_forward.1} parent=1 // pred_check_branch
      %23 = sbr.rel (0) target = $region9
    $region8: #{gnn_model_forward.1} parent=1 // pred_region
      _
    $region9: #{gnn_model_forward.1} parent=1 // pred_fallthru
      _
    // Predicated region
    $region10: #{gnn_model_forward.1} parent=1 // pred_check
      _
    $region11: #{gnn_model_forward.1} parent=1 // pred_check_branch
      %25 = sbr.rel (0) target = $region13
    $region12: #{gnn_model_forward.1} parent=1 // pred_region
      _
    $region13: #{gnn_model_forward.1} parent=1 // pred_fallthru
      _
    // Predicated region
    $region14: #{gnn_model_forward.1} parent=1 // pred_check
      _
    $region15: #{gnn_model_forward.1} parent=1 // pred_check_branch
      %27 = sbr.rel (0) target = $region17
    $region16: #{gnn_model_forward.1} parent=1 // pred_region
      _
    $region17: #{gnn_model_forward.1} parent=1 // pred_fallthru
      _
    // Predicated region
    $region18: #{gnn_model_forward.1} parent=1 // pred_check
      _
    $region19: #{gnn_model_forward.1} parent=1 // pred_check_branch
      %29 = sbr.rel (0) target = $region21
    $region20: #{gnn_model_forward.1} parent=1 // pred_region
      %s31 = ssub.s32 12288, 12288
      %32 = vsyncadd [#allocation3], %s31
      %s33 = sshll.u32 [#allocation2], 4
      %s34 = int_to_ptr.vmem [resolvable:$true] %s33
      %39 = dma.hbm_to_vmem [thread:$0]  %s4, 12288, %s34, [#allocation3], 128, 128, 8
    $region21: #{gnn_model_forward.1} parent=1 // pred_fallthru
      _
    // Predicated region
    $region22: #{gnn_model_forward.1} parent=1 // pred_check
      _
    $region23: #{gnn_model_forward.1} parent=1 // pred_check_branch
      %41 = sbr.rel (0) target = $region25
    $region24: #{gnn_model_forward.1} parent=1 // pred_region
      _
    $region25: #{gnn_model_forward.1} parent=1 // pred_fallthru
      _
    // Predicated region
    $region26: #{gnn_model_forward.1} parent=1 // pred_check
      _
    $region27: #{gnn_model_forward.1} parent=1 // pred_check_branch
      %43 = sbr.rel (0) target = $region29
    $region28: #{gnn_model_forward.1} parent=1 // pred_region
      _
    $region29: #{gnn_model_forward.1} parent=1 // pred_fallthru
      _
    // Predicated region
    $region30: #{gnn_model_forward.1} parent=1 // pred_check
      _
    $region31: #{gnn_model_forward.1} parent=1 // pred_check_branch
      %45 = sbr.rel (0) target = $region33
    $region32: #{gnn_model_forward.1} parent=1 // pred_region
      _
    $region33: #{gnn_model_forward.1} parent=1 // pred_fallthru
      _
    // Predicated region
    $region34: #{gnn_model_forward.1} parent=1 // pred_check
      _
    $region35: #{gnn_model_forward.1} parent=1 // pred_check_branch
      %47 = sbr.rel (0) target = $region37
    $region36: #{gnn_model_forward.1} parent=1 // pred_region
      _
    $region37: #{gnn_model_forward.1} parent=1 // pred_fallthru
      _
    // Predicated region
    $region38: #{gnn_model_forward.1} parent=1 // pred_check
      _
    $region39: #{gnn_model_forward.1} parent=1 // pred_check_branch
      %49 = sbr.rel (0) target = $region41
    $region40: #{gnn_model_forward.1} parent=1 // pred_region
      %50 = dma.done [#allocation3], 12288
    $region41: #{gnn_model_forward.1} parent=1 // pred_fallthru
      _
    %v52 = vld [vmem:[%s0] sm:$0xf]
    %v53 = vld [vmem:[%s0 + $0x4] sm:$0xf]
    %v54 = vld [vmem:[%s0 + $0x8] sm:$0xf]
    %v55 = vld [vmem:[%s2] sm:$0xf]
    %v56 = vld [vmem:[%s2 + $0x4] sm:$0xf]
    %v57 = vld [vmem:[%s2 + $0x8] sm:$0xf]
    %v58 = vld [vmem:[%s2 + $0xc] sm:$0xf]
    %v59 = vld [vmem:[%s2 + $0x10] sm:$0xf]
    %v60 = vld [vmem:[%s2 + $0x14] sm:$0xf]
    %v61 = vld [vmem:[%s2 + $0x18] sm:$0xf]
    %v62 = vld [vmem:[%s2 + $0x1c] sm:$0xf]
    %v63 = vld [vmem:[%s2 + $0x20] sm:$0xf]
    %v64 = vld [vmem:[%s2 + $0x24] sm:$0xf]
    %v65 = vld [vmem:[%s2 + $0x28] sm:$0xf]
    %v66 = vld [vmem:[%s2 + $0x2c] sm:$0xf]
    %v67 = vld [vmem:[%s2 + $0x30] sm:$0xf]
    %v68 = vld [vmem:[%s2 + $0x34] sm:$0xf]
    %v69 = vld [vmem:[%s2 + $0x38] sm:$0xf]
    %v70 = vld [vmem:[%s2 + $0x3c] sm:$0xf]
    %v71 = vld [vmem:[%s3] sm:$0x1]
    %v73 = vlaneseq
    %v74 = vshrl.u32 %v73, 7
    %v75 = vsub.s32 0, %v74
    %v76 = vrot.slane %v71, %v75
    %v81 = vunpack.c.l.b16 %v52
    %v82 = vunpack.c.l.b16 %v53
    %v83 = vunpack.c.l.b16 %v54
    %v84 = vpack.c.b16 %v82, %v81
    %v85 = vpack.c.b16 %v83, %v83
    %v104 = vunpack.c.l.b16 %v55
    %v105 = vunpack.c.l.b16 %v56
    %v106 = vunpack.c.l.b16 %v57
    %v107 = vunpack.c.l.b16 %v58
    %v108 = vunpack.c.l.b16 %v59
    %v109 = vunpack.c.l.b16 %v60
    %v110 = vunpack.c.l.b16 %v61
    %v111 = vunpack.c.l.b16 %v62
    %v112 = vunpack.c.l.b16 %v63
    %v113 = vunpack.c.l.b16 %v64
    %v114 = vunpack.c.l.b16 %v65
    %v115 = vunpack.c.l.b16 %v66
    %v116 = vunpack.c.l.b16 %v67
    %v117 = vunpack.c.l.b16 %v68
    %v118 = vunpack.c.l.b16 %v69
    %v119 = vunpack.c.l.b16 %v70
    %v120 = vpack.c.b16 %v105, %v104
    %v121 = vpack.c.b16 %v107, %v106
    %v122 = vpack.c.b16 %v109, %v108
    %v123 = vpack.c.b16 %v111, %v110
    %v124 = vpack.c.b16 %v113, %v112
    %v125 = vpack.c.b16 %v115, %v114
    %v126 = vpack.c.b16 %v117, %v116
    %v127 = vpack.c.b16 %v119, %v118
    %136 = vmatprep.subr.bf16.mxu0 0
    %137 = vmatpush1.bf16.msra.mxu0 %v120
    %138 = vmatprep.subr.bf16.mxu0 0
    %139 = vmatpush1.bf16.msra.mxu0 %v121
    %140 = vmatprep.subr.bf16.mxu0 0
    %141 = vmatpush1.bf16.msra.mxu0 %v122
    %142 = vmatprep.subr.bf16.mxu0 0
    %143 = vmatpush1.bf16.msra.mxu0 %v123
    %144 = vmatprep.subr.bf16.mxu0 0
    %145 = vmatpush1.bf16.msra.mxu0 %v124
    %146 = vmatprep.subr.bf16.mxu0 0
    %147 = vmatpush1.bf16.msra.mxu0 %v125
    %148 = vmatprep.subr.bf16.mxu0 0
    %149 = vmatpush1.bf16.msra.mxu0 %v126
    %150 = vmatprep.subr.bf16.mxu0 0
    %151 = vmatpush1.bf16.msra.mxu0 %v127
    %152 = vmatprep.subr.bf16.mxu0 0
    %153 = vmatpush1.bf16.msra.mxu0 0
    %154 = vmatprep.subr.bf16.mxu0 0
    %155 = vmatpush1.bf16.msra.mxu0 0
    %156 = vmatprep.subr.bf16.mxu0 0
    %157 = vmatpush1.bf16.msra.mxu0 0
    %158 = vmatprep.subr.bf16.mxu0 0
    %159 = vmatpush1.bf16.msra.mxu0 0
    %160 = vmatprep.subr.bf16.mxu0 0
    %161 = vmatpush1.bf16.msra.mxu0 0
    %162 = vmatprep.subr.bf16.mxu0 0
    %163 = vmatpush1.bf16.msra.mxu0 0
    %164 = vmatprep.subr.bf16.mxu0 0
    %165 = vmatpush1.bf16.msra.mxu0 0
    %166 = vmatprep.subr.bf16.mxu0 0
    %167 = vmatpush1.bf16.msra.mxu0 0
    %168 = vmatprep.mubr.bf16.mxu0 0
    %169 = vmatmul.mubr.bf16.gmra.mrb[0].mxu0 %v84
    %v170 = vpop.f32.mrb[0].mxu0
    %v171 = vadd.f32 %v76, %v170
    %v172 = vpop.f32.mrb[0].mxu0
    %v173 = vpop.f32.mrb[0].mxu0
    %v174 = vadd.f32 %v76, %v173
    %v175 = vpop.f32.mrb[0].mxu0
    %176 = vmatprep.mubr.bf16.mxu0 0
    %177 = vmatmul.mubr.bf16.gmra.mrb[0].mxu0 %v85
    %v178 = vpop.f32.mrb[0].mxu0
    %v179 = vadd.f32 %v76, %v178
    %v180 = vpop.f32.mrb[0].mxu0
    %v181 = vpop.f32.mrb[0].mxu0
    %v182 = vpop.f32.mrb[0].mxu0
    %183 = vdwg.mxu0
    %v184 = vlaneseq
    %v185 = vand.u32 %v184, 127
    %vm186 = vcmp.lt.s32.totalorder %v185, 32
    %v187 = vsel %vm186, 1, 0
    %v188 = vcvt.s32.f32 %v187
    %v189 = vpack.c.bf16 %v174, %v171
    %v190 = vpack.c.bf16 %v188, %v179
    %v191 = vld [vmem:[%s1] sm:$0xf]
    %v192 = vld [vmem:[%s1 + $0x4] sm:$0xf]
    %v193 = vld [vmem:[%s1 + $0x8] sm:$0xf]
    %v194 = vld [vmem:[%s1 + $0xc] sm:$0xf]
    %v195 = vld [vmem:[%s1 + $0x10] sm:$0xf]
    %v196 = vld [vmem:[%s1 + $0x14] sm:$0xf]
    %v197 = vld [vmem:[%s1 + $0x18] sm:$0xf]
    %v198 = vld [vmem:[%s1 + $0x1c] sm:$0xf]
    %v207 = vunpack.c.l.b16 %v191
    %v208 = vunpack.c.l.b16 %v192
    %v209 = vunpack.c.l.b16 %v193
    %v210 = vunpack.c.l.b16 %v194
    %v211 = vunpack.c.l.b16 %v195
    %v212 = vunpack.c.l.b16 %v196
    %v213 = vunpack.c.l.b16 %v197
    %v214 = vunpack.c.l.b16 %v198
    %v215 = vpack.c.b16 %v208, %v207
    %v216 = vpack.c.b16 %v210, %v209
    %v217 = vpack.c.b16 %v212, %v211
    %v218 = vpack.c.b16 %v214, %v213
    %vm219 = vcmask 261120
    %v221 = vsel %vm219, %v215, 0
    %v224 = vsel %vm219, %v216, 0
    %v227 = vsel %vm219, %v217, 0
    %v230 = vsel %vm219, %v218, 0
    %232 = vmatprep.subr.bf16.mxu0 0
    %233 = vmatpush1.bf16.msra.mxu0 %v189
    %234 = vmatprep.subr.bf16.mxu0 0
    %235 = vmatpush1.bf16.msra.mxu0 %v190
    %236 = vmatprep.subr.bf16.mxu0 0
    %237 = vmatpush1.bf16.msra.mxu0 0
    %238 = vmatprep.subr.bf16.mxu0 0
    %239 = vmatpush1.bf16.msra.mxu0 0
    %240 = vmatprep.subr.bf16.mxu0 0
    %241 = vmatpush1.bf16.msra.mxu0 0
    %242 = vmatprep.subr.bf16.mxu0 0
    %243 = vmatpush1.bf16.msra.mxu0 0
    %244 = vmatprep.subr.bf16.mxu0 0
    %245 = vmatpush1.bf16.msra.mxu0 0
    %246 = vmatprep.subr.bf16.mxu0 0
    %247 = vmatpush1.bf16.msra.mxu0 0
    %248 = vmatprep.subr.bf16.mxu0 0
    %249 = vmatpush1.bf16.msra.mxu0 0
    %250 = vmatprep.subr.bf16.mxu0 0
    %251 = vmatpush1.bf16.msra.mxu0 0
    %252 = vmatprep.subr.bf16.mxu0 0
    %253 = vmatpush1.bf16.msra.mxu0 0
    %254 = vmatprep.subr.bf16.mxu0 0
    %255 = vmatpush1.bf16.msra.mxu0 0
    %256 = vmatprep.subr.bf16.mxu0 0
    %257 = vmatpush1.bf16.msra.mxu0 0
    %258 = vmatprep.subr.bf16.mxu0 0
    %259 = vmatpush1.bf16.msra.mxu0 0
    %260 = vmatprep.subr.bf16.mxu0 0
    %261 = vmatpush1.bf16.msra.mxu0 0
    %262 = vmatprep.subr.bf16.mxu0 0
    %263 = vmatpush1.bf16.msra.mxu0 0
    %264 = vmatprep.mubr.bf16.mxu0 0
    %265 = vmatmul.mubr.bf16.gmra.mrb[0].mxu0 %v221
    %v266 = vpop.f32.mrb[0].mxu0
    %v267 = vadd.f32 0.0, %v266
    %v268 = vpop.f32.mrb[0].mxu0
    %v269 = vpop.f32.mrb[0].mxu0
    %v270 = vadd.f32 0.0, %v269
    %v271 = vpop.f32.mrb[0].mxu0
    %272 = vmatprep.mubr.bf16.mxu0 0
    %273 = vmatmul.mubr.bf16.gmra.mrb[0].mxu0 %v224
    %v274 = vpop.f32.mrb[0].mxu0
    %v275 = vadd.f32 0.0, %v274
    %v276 = vpop.f32.mrb[0].mxu0
    %v277 = vpop.f32.mrb[0].mxu0
    %v278 = vadd.f32 0.0, %v277
    %v279 = vpop.f32.mrb[0].mxu0
    %280 = vmatprep.mubr.bf16.mxu0 0
    %281 = vmatmul.mubr.bf16.gmra.mrb[0].mxu0 %v227
    %v282 = vpop.f32.mrb[0].mxu0
    %v283 = vadd.f32 0.0, %v282
    %v284 = vpop.f32.mrb[0].mxu0
    %v285 = vpop.f32.mrb[0].mxu0
    %v286 = vadd.f32 0.0, %v285
    %v287 = vpop.f32.mrb[0].mxu0
    %288 = vmatprep.mubr.bf16.mxu0 0
    %289 = vmatmul.mubr.bf16.gmra.mrb[0].mxu0 %v230
    %v290 = vpop.f32.mrb[0].mxu0
    %v291 = vadd.f32 0.0, %v290
    %v292 = vpop.f32.mrb[0].mxu0
    %v293 = vpop.f32.mrb[0].mxu0
    %v294 = vadd.f32 0.0, %v293
    %v295 = vpop.f32.mrb[0].mxu0
    %296 = vdwg.mxu0
    %v297 = vpack.c.bf16 %v270, %v267
    %v298 = vpack.c.bf16 %v278, %v275
    %v299 = vpack.c.bf16 %v286, %v283
    %v300 = vpack.c.bf16 %v294, %v291
    %v301 = vld [vmem:[#allocation2] sm:$0xff]
    %v302 = vld [vmem:[#allocation2 + $0x8] sm:$0xff]
    %v303 = vld [vmem:[#allocation2 + $0x10] sm:$0xff]
    %v304 = vld [vmem:[#allocation2 + $0x18] sm:$0xff]
    %v305 = vld [vmem:[#allocation2 + $0x20] sm:$0xff]
    %v306 = vld [vmem:[#allocation2 + $0x28] sm:$0xff]
    %v307 = vld [vmem:[#allocation2 + $0x30] sm:$0xff]
    %v308 = vld [vmem:[#allocation2 + $0x38] sm:$0xff]
    %v309 = vld [vmem:[#allocation2 + $0x40] sm:$0xff]
    %v310 = vld [vmem:[#allocation2 + $0x48] sm:$0xff]
    %v311 = vld [vmem:[#allocation2 + $0x50] sm:$0xff]
    %v312 = vld [vmem:[#allocation2 + $0x58] sm:$0xff]
    %v313 = vld [vmem:[#allocation2 + $0x60] sm:$0xff]
    %v314 = vld [vmem:[#allocation2 + $0x68] sm:$0xff]
    %v315 = vld [vmem:[#allocation2 + $0x70] sm:$0xff]
    %v316 = vld [vmem:[#allocation2 + $0x78] sm:$0xff]
    %v317 = vld [vmem:[#allocation2 + $0x80] sm:$0xff]
    %v318 = vld [vmem:[#allocation2 + $0x88] sm:$0xff]
    %v319 = vld [vmem:[#allocation2 + $0x90] sm:$0xff]
    %v320 = vld [vmem:[#allocation2 + $0x98] sm:$0xff]
    %v321 = vld [vmem:[#allocation2 + $0xa0] sm:$0xff]
    %v322 = vld [vmem:[#allocation2 + $0xa8] sm:$0xff]
    %v323 = vld [vmem:[#allocation2 + $0xb0] sm:$0xff]
    %v324 = vld [vmem:[#allocation2 + $0xb8] sm:$0xff]
    %v325 = vld [vmem:[#allocation2 + $0xc0] sm:$0xff]
    %v326 = vld [vmem:[#allocation2 + $0xc8] sm:$0xff]
    %v327 = vld [vmem:[#allocation2 + $0xd0] sm:$0xff]
    %v328 = vld [vmem:[#allocation2 + $0xd8] sm:$0xff]
    %v329 = vld [vmem:[#allocation2 + $0xe0] sm:$0xff]
    %v330 = vld [vmem:[#allocation2 + $0xe8] sm:$0xff]
    %v331 = vld [vmem:[#allocation2 + $0xf0] sm:$0xff]
    %v332 = vld [vmem:[#allocation2 + $0xf8] sm:$0xff]
    %v333 = vld [vmem:[#allocation2 + $0x100] sm:$0xff]
    %v334 = vld [vmem:[#allocation2 + $0x108] sm:$0xff]
    %v335 = vld [vmem:[#allocation2 + $0x110] sm:$0xff]
    %v336 = vld [vmem:[#allocation2 + $0x118] sm:$0xff]
    %v337 = vld [vmem:[#allocation2 + $0x120] sm:$0xff]
    %v338 = vld [vmem:[#allocation2 + $0x128] sm:$0xff]
    %v339 = vld [vmem:[#allocation2 + $0x130] sm:$0xff]
    %v340 = vld [vmem:[#allocation2 + $0x138] sm:$0xff]
    %v341 = vld [vmem:[#allocation2 + $0x140] sm:$0xff]
    %v342 = vld [vmem:[#allocation2 + $0x148] sm:$0xff]
    %v343 = vld [vmem:[#allocation2 + $0x150] sm:$0xff]
    %v344 = vld [vmem:[#allocation2 + $0x158] sm:$0xff]
    %v345 = vld [vmem:[#allocation2 + $0x160] sm:$0xff]
    %v346 = vld [vmem:[#allocation2 + $0x168] sm:$0xff]
    %v347 = vld [vmem:[#allocation2 + $0x170] sm:$0xff]
    %v348 = vld [vmem:[#allocation2 + $0x178] sm:$0xff]
    %v397 = vunpack.c.l.b16 %v301
    %v398 = vunpack.c.h.b16 %v301
    %v399 = vunpack.c.l.b16 %v302
    %v400 = vunpack.c.h.b16 %v302
    %v401 = vunpack.c.l.b16 %v303
    %v402 = vunpack.c.h.b16 %v303
    %v403 = vunpack.c.l.b16 %v304
    %v404 = vunpack.c.h.b16 %v304
    %v405 = vunpack.c.l.b16 %v305
    %v406 = vunpack.c.h.b16 %v305
    %v407 = vunpack.c.l.b16 %v306
    %v408 = vunpack.c.h.b16 %v306
    %v409 = vunpack.c.l.b16 %v307
    %v410 = vunpack.c.h.b16 %v307
    %v411 = vunpack.c.l.b16 %v308
    %v412 = vunpack.c.h.b16 %v308
    %v413 = vunpack.c.l.b16 %v309
    %v414 = vunpack.c.h.b16 %v309
    %v415 = vunpack.c.l.b16 %v310
    %v416 = vunpack.c.h.b16 %v310
    %v417 = vunpack.c.l.b16 %v311
    %v418 = vunpack.c.h.b16 %v311
    %v419 = vunpack.c.l.b16 %v312
    %v420 = vunpack.c.h.b16 %v312
    %v421 = vunpack.c.l.b16 %v313
    %v422 = vunpack.c.h.b16 %v313
    %v423 = vunpack.c.l.b16 %v314
    %v424 = vunpack.c.h.b16 %v314
    %v425 = vunpack.c.l.b16 %v315
    %v426 = vunpack.c.h.b16 %v315
    %v427 = vunpack.c.l.b16 %v316
    %v428 = vunpack.c.h.b16 %v316
    %v429 = vunpack.c.l.b16 %v317
    %v430 = vunpack.c.h.b16 %v317
    %v431 = vunpack.c.l.b16 %v318
    %v432 = vunpack.c.h.b16 %v318
    %v433 = vunpack.c.l.b16 %v319
    %v434 = vunpack.c.h.b16 %v319
    %v435 = vunpack.c.l.b16 %v320
    %v436 = vunpack.c.h.b16 %v320
    %v437 = vunpack.c.l.b16 %v321
    %v438 = vunpack.c.h.b16 %v321
    %v439 = vunpack.c.l.b16 %v322
    %v440 = vunpack.c.h.b16 %v322
    %v441 = vunpack.c.l.b16 %v323
    %v442 = vunpack.c.h.b16 %v323
    %v443 = vunpack.c.l.b16 %v324
    %v444 = vunpack.c.h.b16 %v324
    %v445 = vunpack.c.l.b16 %v325
    %v446 = vunpack.c.h.b16 %v325
    %v447 = vunpack.c.l.b16 %v326
    %v448 = vunpack.c.h.b16 %v326
    %v449 = vunpack.c.l.b16 %v327
    %v450 = vunpack.c.h.b16 %v327
    %v451 = vunpack.c.l.b16 %v328
    %v452 = vunpack.c.h.b16 %v328
    %v453 = vunpack.c.l.b16 %v329
    %v454 = vunpack.c.h.b16 %v329
    %v455 = vunpack.c.l.b16 %v330
    %v456 = vunpack.c.h.b16 %v330
    %v457 = vunpack.c.l.b16 %v331
    %v458 = vunpack.c.h.b16 %v331
    %v459 = vunpack.c.l.b16 %v332
    %v460 = vunpack.c.h.b16 %v332
    %v461 = vunpack.c.l.b16 %v333
    %v462 = vunpack.c.h.b16 %v333
    %v463 = vunpack.c.l.b16 %v334
    %v464 = vunpack.c.h.b16 %v334
    %v465 = vunpack.c.l.b16 %v335
    %v466 = vunpack.c.h.b16 %v335
    %v467 = vunpack.c.l.b16 %v336
    %v468 = vunpack.c.h.b16 %v336
    %v469 = vunpack.c.l.b16 %v337
    %v470 = vunpack.c.h.b16 %v337
    %v471 = vunpack.c.l.b16 %v338
    %v472 = vunpack.c.h.b16 %v338
    %v473 = vunpack.c.l.b16 %v339
    %v474 = vunpack.c.h.b16 %v339
    %v475 = vunpack.c.l.b16 %v340
    %v476 = vunpack.c.h.b16 %v340
    %v477 = vunpack.c.l.b16 %v341
    %v478 = vunpack.c.h.b16 %v341
    %v479 = vunpack.c.l.b16 %v342
    %v480 = vunpack.c.h.b16 %v342
    %v481 = vunpack.c.l.b16 %v343
    %v482 = vunpack.c.h.b16 %v343
    %v483 = vunpack.c.l.b16 %v344
    %v484 = vunpack.c.h.b16 %v344
    %v485 = vunpack.c.l.b16 %v345
    %v486 = vunpack.c.h.b16 %v345
    %v487 = vunpack.c.l.b16 %v346
    %v488 = vunpack.c.h.b16 %v346
    %v489 = vunpack.c.l.b16 %v347
    %v490 = vunpack.c.h.b16 %v347
    %v491 = vunpack.c.l.b16 %v348
    %v492 = vunpack.c.h.b16 %v348
    %v493 = vpack.c.b16 %v399, %v397
    %v494 = vpack.c.b16 %v400, %v398
    %v495 = vpack.c.b16 %v403, %v401
    %v496 = vpack.c.b16 %v404, %v402
    %v497 = vpack.c.b16 %v407, %v405
    %v498 = vpack.c.b16 %v408, %v406
    %v499 = vpack.c.b16 %v411, %v409
    %v500 = vpack.c.b16 %v412, %v410
    %v501 = vpack.c.b16 %v415, %v413
    %v502 = vpack.c.b16 %v416, %v414
    %v503 = vpack.c.b16 %v419, %v417
    %v504 = vpack.c.b16 %v420, %v418
    %v505 = vpack.c.b16 %v423, %v421
    %v506 = vpack.c.b16 %v424, %v422
    %v507 = vpack.c.b16 %v427, %v425
    %v508 = vpack.c.b16 %v428, %v426
    %v509 = vpack.c.b16 %v431, %v429
    %v510 = vpack.c.b16 %v432, %v430
    %v511 = vpack.c.b16 %v435, %v433
    %v512 = vpack.c.b16 %v436, %v434
    %v513 = vpack.c.b16 %v439, %v437
    %v514 = vpack.c.b16 %v440, %v438
    %v515 = vpack.c.b16 %v443, %v441
    %v516 = vpack.c.b16 %v444, %v442
    %v517 = vpack.c.b16 %v447, %v445
    %v518 = vpack.c.b16 %v448, %v446
    %v519 = vpack.c.b16 %v451, %v449
    %v520 = vpack.c.b16 %v452, %v450
    %v521 = vpack.c.b16 %v455, %v453
    %v522 = vpack.c.b16 %v456, %v454
    %v523 = vpack.c.b16 %v459, %v457
    %v524 = vpack.c.b16 %v460, %v458
    %v525 = vpack.c.b16 %v463, %v461
    %v526 = vpack.c.b16 %v464, %v462
    %v527 = vpack.c.b16 %v467, %v465
    %v528 = vpack.c.b16 %v468, %v466
    %v529 = vpack.c.b16 %v471, %v469
    %v530 = vpack.c.b16 %v472, %v470
    %v531 = vpack.c.b16 %v475, %v473
    %v532 = vpack.c.b16 %v476, %v474
    %v533 = vpack.c.b16 %v479, %v477
    %v534 = vpack.c.b16 %v480, %v478
    %v535 = vpack.c.b16 %v483, %v481
    %v536 = vpack.c.b16 %v484, %v482
    %v537 = vpack.c.b16 %v487, %v485
    %v538 = vpack.c.b16 %v488, %v486
    %v539 = vpack.c.b16 %v491, %v489
    %v540 = vpack.c.b16 %v492, %v490
    %589 = vmatprep.subr.bf16.mxu0 %v494
    %590 = vmatpush1.bf16.msra.mxu0 %v493
    %591 = vmatprep.subr.bf16.mxu0 %v496
    %592 = vmatpush1.bf16.msra.mxu0 %v495
    %593 = vmatprep.subr.bf16.mxu0 %v498
    %594 = vmatpush1.bf16.msra.mxu0 %v497
    %595 = vmatprep.subr.bf16.mxu0 %v500
    %596 = vmatpush1.bf16.msra.mxu0 %v499
    %597 = vmatprep.subr.bf16.mxu0 %v502
    %598 = vmatpush1.bf16.msra.mxu0 %v501
    %599 = vmatprep.subr.bf16.mxu0 %v504
    %600 = vmatpush1.bf16.msra.mxu0 %v503
    %601 = vmatprep.subr.bf16.mxu0 %v506
    %602 = vmatpush1.bf16.msra.mxu0 %v505
    %603 = vmatprep.subr.bf16.mxu0 %v508
    %604 = vmatpush1.bf16.msra.mxu0 %v507
    %605 = vmatprep.subr.bf16.mxu0 %v510
    %606 = vmatpush1.bf16.msra.mxu0 %v509
    %607 = vmatprep.subr.bf16.mxu0 %v512
    %608 = vmatpush1.bf16.msra.mxu0 %v511
    %609 = vmatprep.subr.bf16.mxu0 %v514
    %610 = vmatpush1.bf16.msra.mxu0 %v513
    %611 = vmatprep.subr.bf16.mxu0 %v516
    %612 = vmatpush1.bf16.msra.mxu0 %v515
    %613 = vmatprep.subr.bf16.mxu0 %v518
    %614 = vmatpush1.bf16.msra.mxu0 %v517
    %615 = vmatprep.subr.bf16.mxu0 %v520
    %616 = vmatpush1.bf16.msra.mxu0 %v519
    %617 = vmatprep.subr.bf16.mxu0 %v522
    %618 = vmatpush1.bf16.msra.mxu0 %v521
    %619 = vmatprep.subr.bf16.mxu0 %v524
    %620 = vmatpush1.bf16.msra.mxu0 %v523
    %621 = vmatprep.mubr.bf16.mxu0 %v299
    %622 = vmatmul.mubr.bf16.gmra.mrb[0].mxu0 %v297
    %v623 = vpop.f32.mrb[0].mxu0
    %v624 = vadd.f32 0.0, %v623
    %v625 = vpop.f32.mrb[0].mxu0
    %v626 = vpop.f32.mrb[0].mxu0
    %v627 = vadd.f32 0.0, %v626
    %v628 = vpop.f32.mrb[0].mxu0
    %629 = vmatprep.mubr.bf16.mxu0 %v300
    %630 = vmatmul.mubr.bf16.gmra.mrb[0].mxu0 %v298
    %v631 = vpop.f32.mrb[0].mxu0
    %v632 = vadd.f32 0.0, %v631
    %v633 = vpop.f32.mrb[0].mxu0
    %v634 = vpop.f32.mrb[0].mxu0
    %v635 = vpop.f32.mrb[0].mxu0
    %v636 = vadd.f32 0.0, %v635
    %637 = vdwg.mxu0
    %638 = vmatprep.subr.bf16.mxu0 %v526
    %639 = vmatpush1.bf16.msra.mxu0 %v525
    %640 = vmatprep.subr.bf16.mxu0 %v528
    %641 = vmatpush1.bf16.msra.mxu0 %v527
    %642 = vmatprep.subr.bf16.mxu0 %v530
    %643 = vmatpush1.bf16.msra.mxu0 %v529
    %644 = vmatprep.subr.bf16.mxu0 %v532
    %645 = vmatpush1.bf16.msra.mxu0 %v531
    %646 = vmatprep.subr.bf16.mxu0 %v534
    %647 = vmatpush1.bf16.msra.mxu0 %v533
    %648 = vmatprep.subr.bf16.mxu0 %v536
    %649 = vmatpush1.bf16.msra.mxu0 %v535
    %650 = vmatprep.subr.bf16.mxu0 %v538
    %651 = vmatpush1.bf16.msra.mxu0 %v537
    %652 = vmatprep.subr.bf16.mxu0 %v540
    %653 = vmatpush1.bf16.msra.mxu0 %v539
    %654 = vmatprep.subr.bf16.mxu0 0
    %655 = vmatpush1.bf16.msra.mxu0 0
    %656 = vmatprep.subr.bf16.mxu0 0
    %657 = vmatpush1.bf16.msra.mxu0 0
    %658 = vmatprep.subr.bf16.mxu0 0
    %659 = vmatpush1.bf16.msra.mxu0 0
    %660 = vmatprep.subr.bf16.mxu0 0
    %661 = vmatpush1.bf16.msra.mxu0 0
    %662 = vmatprep.subr.bf16.mxu0 0
    %663 = vmatpush1.bf16.msra.mxu0 0
    %664 = vmatprep.subr.bf16.mxu0 0
    %665 = vmatpush1.bf16.msra.mxu0 0
    %666 = vmatprep.subr.bf16.mxu0 0
    %667 = vmatpush1.bf16.msra.mxu0 0
    %668 = vmatprep.subr.bf16.mxu0 0
    %669 = vmatpush1.bf16.msra.mxu0 0
    %670 = vmatprep.mubr.bf16.mxu0 0
    %671 = vmatmul.mubr.bf16.gmra.mrb[0].mxu0 %v189
    %v672 = vpop.f32.mrb[0].mxu0
    %v673 = vadd.f32 %v624, %v672
    %v674 = vpop.f32.mrb[0].mxu0
    %v675 = vpop.f32.mrb[0].mxu0
    %v676 = vadd.f32 %v627, %v675
    %v677 = vpop.f32.mrb[0].mxu0
    %678 = vmatprep.mubr.bf16.mxu0 0
    %679 = vmatmul.mubr.bf16.gmra.mrb[0].mxu0 %v190
    %v680 = vpop.f32.mrb[0].mxu0
    %v681 = vadd.f32 %v632, %v680
    %v682 = vpop.f32.mrb[0].mxu0
    %v683 = vpop.f32.mrb[0].mxu0
    %v684 = vpop.f32.mrb[0].mxu0
    %v685 = vadd.f32 %v636, %v684
    %686 = vdwg.mxu0
    %v687 = vld [vmem:[%s5] sm:$0x1]
    %v688 = vld [vmem:[%s6] sm:$0x1]
    %v689 = vadd.f32 %v673, %v676
    %v690 = vadd.f32 %v689, %v681
    %v691 = vrot.slane %v690, 4
    %v692 = vadd.f32 %v690, %v691
    %v693 = vrot.slane %v692, 2
    %v694 = vadd.f32 %v692, %v693
    %v695 = vrot.slane %v694, 1
    %v696 = vadd.f32 %v694, %v695
    %v697 = vmul.f32 %v696, 0.041666668
    %v698 = vmul.f32 %v673, %v673
    %v699 = vmul.f32 %v676, %v676
    %v700 = vmul.f32 %v681, %v681
    %v701 = vadd.f32 %v698, %v699
    %v702 = vadd.f32 %v701, %v700
    %v703 = vrot.slane %v702, 4
    %v704 = vadd.f32 %v702, %v703
    %v705 = vrot.slane %v704, 2
    %v706 = vadd.f32 %v704, %v705
    %v707 = vrot.slane %v706, 1
    %v708 = vadd.f32 %v706, %v707
    %v709 = vmul.f32 %v708, 0.041666668
    %v710 = vmul.f32 %v697, %v697
    %v711 = vsub.f32 %v709, %v710
    %v712 = vmax.f32 %v711, 0.0
    %v713 = vsub.f32 %v673, %v697
    %v714 = vsub.f32 %v676, %v697
    %v715 = vsub.f32 %v681, %v697
    %v716 = vadd.f32 %v712, 1e-05
    %v717 = vrsqrt.pop %v716
    %v718 = vmul.f32 %v713, %v717
    %v719 = vmul.f32 %v714, %v717
    %v720 = vmul.f32 %v715, %v717
    %v722 = vlaneseq
    %v723 = vshrl.u32 %v722, 7
    %v724 = vsub.s32 0, %v723
    %v725 = vrot.slane %v687, %v724
    %v727 = vmul.f32 %v725, %v718
    %v728 = vmul.f32 %v725, %v719
    %v729 = vmul.f32 %v725, %v720
    %v731 = vlaneseq
    %v732 = vshrl.u32 %v731, 7
    %v733 = vsub.s32 0, %v732
    %v734 = vrot.slane %v688, %v733
    %v736 = vadd.f32 %v727, %v734
    %v737 = vadd.f32 %v728, %v734
    %v738 = vadd.f32 %v729, %v734
    %vm739 = vcmp.ge.f32.partialorder %v736, 0.0
    %vm740 = vcmp.ge.f32.partialorder %v737, 0.0
    %vm741 = vcmp.ge.f32.partialorder %v738, 0.0
    %v742 = vmul.f32 %v736, 0.01
    %v743 = vmul.f32 %v737, 0.01
    %v744 = vmul.f32 %v738, 0.01
    %v745 = vsel %vm739, %v736, %v742
    %v746 = vsel %vm740, %v737, %v743
    %v747 = vsel %vm741, %v738, %v744
    %v748 = vrot.slane %v685, 4
    %v749 = vadd.f32 %v685, %v748
    %v750 = vrot.slane %v749, 2
    %v751 = vadd.f32 %v749, %v750
    %v752 = vrot.slane %v751, 1
    %v753 = vadd.f32 %v751, %v752
    %v754 = vmul.f32 %v753, 0.125
    %v755 = vmul.f32 %v685, %v685
    %v756 = vrot.slane %v755, 4
    %v757 = vadd.f32 %v755, %v756
    %v758 = vrot.slane %v757, 2
    %v759 = vadd.f32 %v757, %v758
    %v760 = vrot.slane %v759, 1
    %v761 = vadd.f32 %v759, %v760
    %v762 = vmul.f32 %v761, 0.125
    %v763 = vmul.f32 %v754, %v754
    %v764 = vsub.f32 %v762, %v763
    %v765 = vmax.f32 %v764, 0.0
    %v766 = vsub.f32 %v685, %v754
    %v767 = vadd.f32 %v765, 1e-05
    %v768 = vrsqrt.pop %v767
    %v769 = vmul.f32 %v766, %v768
    %v770 = vmul.f32 %v725, %v769
    %v771 = vadd.f32 %v770, %v734
    %vm772 = vcmp.ge.f32.partialorder %v771, 0.0
    %v773 = vmul.f32 %v771, 0.01
    %v774 = vsel %vm772, %v771, %v773
    %v775 = vpack.c.bf16 %v746, %v745
    %v776 = vpack.c.bf16 %v774, %v747
    %777 = vmatprep.subr.bf16.mxu0 0
    %778 = vmatpush1.bf16.msra.mxu0 %v775
    %779 = vmatprep.subr.bf16.mxu0 0
    %780 = vmatpush1.bf16.msra.mxu0 %v776
    %781 = vmatprep.subr.bf16.mxu0 0
    %782 = vmatpush1.bf16.msra.mxu0 0
    %783 = vmatprep.subr.bf16.mxu0 0
    %784 = vmatpush1.bf16.msra.mxu0 0
    %785 = vmatprep.subr.bf16.mxu0 0
    %786 = vmatpush1.bf16.msra.mxu0 0
    %787 = vmatprep.subr.bf16.mxu0 0
    %788 = vmatpush1.bf16.msra.mxu0 0
    %789 = vmatprep.subr.bf16.mxu0 0
    %790 = vmatpush1.bf16.msra.mxu0 0
    %791 = vmatprep.subr.bf16.mxu0 0
    %792 = vmatpush1.bf16.msra.mxu0 0
    %793 = vmatprep.subr.bf16.mxu0 0
    %794 = vmatpush1.bf16.msra.mxu0 0
    %795 = vmatprep.subr.bf16.mxu0 0
    %796 = vmatpush1.bf16.msra.mxu0 0
    %797 = vmatprep.subr.bf16.mxu0 0
    %798 = vmatpush1.bf16.msra.mxu0 0
    %799 = vmatprep.subr.bf16.mxu0 0
    %800 = vmatpush1.bf16.msra.mxu0 0
    %801 = vmatprep.subr.bf16.mxu0 0
    %802 = vmatpush1.bf16.msra.mxu0 0
    %803 = vmatprep.subr.bf16.mxu0 0
    %804 = vmatpush1.bf16.msra.mxu0 0
    %805 = vmatprep.subr.bf16.mxu0 0
    %806 = vmatpush1.bf16.msra.mxu0 0
    %807 = vmatprep.subr.bf16.mxu0 0
    %808 = vmatpush1.bf16.msra.mxu0 0
    %809 = vmatprep.mubr.bf16.mxu0 0
    %810 = vmatmul.mubr.bf16.gmra.mrb[0].mxu0 %v221
    %v811 = vpop.f32.mrb[0].mxu0
    %v812 = vadd.f32 0.0, %v811
    %v813 = vpop.f32.mrb[0].mxu0
    %v814 = vpop.f32.mrb[0].mxu0
    %v815 = vadd.f32 0.0, %v814
    %v816 = vpop.f32.mrb[0].mxu0
    %817 = vmatprep.mubr.bf16.mxu0 0
    %818 = vmatmul.mubr.bf16.gmra.mrb[0].mxu0 %v224
    %v819 = vpop.f32.mrb[0].mxu0
    %v820 = vadd.f32 0.0, %v819
    %v821 = vpop.f32.mrb[0].mxu0
    %v822 = vpop.f32.mrb[0].mxu0
    %v823 = vadd.f32 0.0, %v822
    %v824 = vpop.f32.mrb[0].mxu0
    %825 = vmatprep.mubr.bf16.mxu0 0
    %826 = vmatmul.mubr.bf16.gmra.mrb[0].mxu0 %v227
    %v827 = vpop.f32.mrb[0].mxu0
    %v828 = vadd.f32 0.0, %v827
    %v829 = vpop.f32.mrb[0].mxu0
    %v830 = vpop.f32.mrb[0].mxu0
    %v831 = vadd.f32 0.0, %v830
    %v832 = vpop.f32.mrb[0].mxu0
    %833 = vmatprep.mubr.bf16.mxu0 0
    %834 = vmatmul.mubr.bf16.gmra.mrb[0].mxu0 %v230
    %v835 = vpop.f32.mrb[0].mxu0
    %v836 = vadd.f32 0.0, %v835
    %v837 = vpop.f32.mrb[0].mxu0
    %v838 = vpop.f32.mrb[0].mxu0
    %v839 = vadd.f32 0.0, %v838
    %v840 = vpop.f32.mrb[0].mxu0
    %841 = vdwg.mxu0
    %v842 = vpack.c.bf16 %v815, %v812
    %v843 = vpack.c.bf16 %v823, %v820
    %v844 = vpack.c.bf16 %v831, %v828
    %v845 = vpack.c.bf16 %v839, %v836
    %s846 = scalar_lea.vmem [#allocation2], 384
    %v847 = vld [vmem:[%s846] sm:$0xff]
    %v848 = vld [vmem:[%s846 + $0x8] sm:$0xff]
    %v849 = vld [vmem:[%s846 + $0x10] sm:$0xff]
    %v850 = vld [vmem:[%s846 + $0x18] sm:$0xff]
    %v851 = vld [vmem:[%s846 + $0x20] sm:$0xff]
    %v852 = vld [vmem:[%s846 + $0x28] sm:$0xff]
    %v853 = vld [vmem:[%s846 + $0x30] sm:$0xff]
    %v854 = vld [vmem:[%s846 + $0x38] sm:$0xff]
    %v855 = vld [vmem:[%s846 + $0x40] sm:$0xff]
    %v856 = vld [vmem:[%s846 + $0x48] sm:$0xff]
    %v857 = vld [vmem:[%s846 + $0x50] sm:$0xff]
    %v858 = vld [vmem:[%s846 + $0x58] sm:$0xff]
    %v859 = vld [vmem:[%s846 + $0x60] sm:$0xff]
    %v860 = vld [vmem:[%s846 + $0x68] sm:$0xff]
    %v861 = vld [vmem:[%s846 + $0x70] sm:$0xff]
    %v862 = vld [vmem:[%s846 + $0x78] sm:$0xff]
    %v863 = vld [vmem:[%s846 + $0x80] sm:$0xff]
    %v864 = vld [vmem:[%s846 + $0x88] sm:$0xff]
    %v865 = vld [vmem:[%s846 + $0x90] sm:$0xff]
    %v866 = vld [vmem:[%s846 + $0x98] sm:$0xff]
    %v867 = vld [vmem:[%s846 + $0xa0] sm:$0xff]
    %v868 = vld [vmem:[%s846 + $0xa8] sm:$0xff]
    %v869 = vld [vmem:[%s846 + $0xb0] sm:$0xff]
    %v870 = vld [vmem:[%s846 + $0xb8] sm:$0xff]
    %v871 = vld [vmem:[%s846 + $0xc0] sm:$0xff]
    %v872 = vld [vmem:[%s846 + $0xc8] sm:$0xff]
    %v873 = vld [vmem:[%s846 + $0xd0] sm:$0xff]
    %v874 = vld [vmem:[%s846 + $0xd8] sm:$0xff]
    %v875 = vld [vmem:[%s846 + $0xe0] sm:$0xff]
    %v876 = vld [vmem:[%s846 + $0xe8] sm:$0xff]
    %v877 = vld [vmem:[%s846 + $0xf0] sm:$0xff]
    %v878 = vld [vmem:[%s846 + $0xf8] sm:$0xff]
    %v879 = vld [vmem:[%s846 + $0x100] sm:$0xff]
    %v880 = vld [vmem:[%s846 + $0x108] sm:$0xff]
    %v881 = vld [vmem:[%s846 + $0x110] sm:$0xff]
    %v882 = vld [vmem:[%s846 + $0x118] sm:$0xff]
    %v883 = vld [vmem:[%s846 + $0x120] sm:$0xff]
    %v884 = vld [vmem:[%s846 + $0x128] sm:$0xff]
    %v885 = vld [vmem:[%s846 + $0x130] sm:$0xff]
    %v886 = vld [vmem:[%s846 + $0x138] sm:$0xff]
    %v887 = vld [vmem:[%s846 + $0x140] sm:$0xff]
    %v888 = vld [vmem:[%s846 + $0x148] sm:$0xff]
    %v889 = vld [vmem:[%s846 + $0x150] sm:$0xff]
    %v890 = vld [vmem:[%s846 + $0x158] sm:$0xff]
    %v891 = vld [vmem:[%s846 + $0x160] sm:$0xff]
    %v892 = vld [vmem:[%s846 + $0x168] sm:$0xff]
    %v893 = vld [vmem:[%s846 + $0x170] sm:$0xff]
    %v894 = vld [vmem:[%s846 + $0x178] sm:$0xff]
    %v943 = vunpack.c.l.b16 %v847
    %v944 = vunpack.c.h.b16 %v847
    %v945 = vunpack.c.l.b16 %v848
    %v946 = vunpack.c.h.b16 %v848
    %v947 = vunpack.c.l.b16 %v849
    %v948 = vunpack.c.h.b16 %v849
    %v949 = vunpack.c.l.b16 %v850
    %v950 = vunpack.c.h.b16 %v850
    %v951 = vunpack.c.l.b16 %v851
    %v952 = vunpack.c.h.b16 %v851
    %v953 = vunpack.c.l.b16 %v852
    %v954 = vunpack.c.h.b16 %v852
    %v955 = vunpack.c.l.b16 %v853
    %v956 = vunpack.c.h.b16 %v853
    %v957 = vunpack.c.l.b16 %v854
    %v958 = vunpack.c.h.b16 %v854
    %v959 = vunpack.c.l.b16 %v855
    %v960 = vunpack.c.h.b16 %v855
    %v961 = vunpack.c.l.b16 %v856
    %v962 = vunpack.c.h.b16 %v856
    %v963 = vunpack.c.l.b16 %v857
    %v964 = vunpack.c.h.b16 %v857
    %v965 = vunpack.c.l.b16 %v858
    %v966 = vunpack.c.h.b16 %v858
    %v967 = vunpack.c.l.b16 %v859
    %v968 = vunpack.c.h.b16 %v859
    %v969 = vunpack.c.l.b16 %v860
    %v970 = vunpack.c.h.b16 %v860
    %v971 = vunpack.c.l.b16 %v861
    %v972 = vunpack.c.h.b16 %v861
    %v973 = vunpack.c.l.b16 %v862
    %v974 = vunpack.c.h.b16 %v862
    %v975 = vunpack.c.l.b16 %v863
    %v976 = vunpack.c.h.b16 %v863
    %v977 = vunpack.c.l.b16 %v864
    %v978 = vunpack.c.h.b16 %v864
    %v979 = vunpack.c.l.b16 %v865
    %v980 = vunpack.c.h.b16 %v865
    %v981 = vunpack.c.l.b16 %v866
    %v982 = vunpack.c.h.b16 %v866
    %v983 = vunpack.c.l.b16 %v867
    %v984 = vunpack.c.h.b16 %v867
    %v985 = vunpack.c.l.b16 %v868
    %v986 = vunpack.c.h.b16 %v868
    %v987 = vunpack.c.l.b16 %v869
    %v988 = vunpack.c.h.b16 %v869
    %v989 = vunpack.c.l.b16 %v870
    %v990 = vunpack.c.h.b16 %v870
    %v991 = vunpack.c.l.b16 %v871
    %v992 = vunpack.c.h.b16 %v871
    %v993 = vunpack.c.l.b16 %v872
    %v994 = vunpack.c.h.b16 %v872
    %v995 = vunpack.c.l.b16 %v873
    %v996 = vunpack.c.h.b16 %v873
    %v997 = vunpack.c.l.b16 %v874
    %v998 = vunpack.c.h.b16 %v874
    %v999 = vunpack.c.l.b16 %v875
    %v1000 = vunpack.c.h.b16 %v875
    %v1001 = vunpack.c.l.b16 %v876
    %v1002 = vunpack.c.h.b16 %v876
    %v1003 = vunpack.c.l.b16 %v877
    %v1004 = vunpack.c.h.b16 %v877
    %v1005 = vunpack.c.l.b16 %v878
    %v1006 = vunpack.c.h.b16 %v878
    %v1007 = vunpack.c.l.b16 %v879
    %v1008 = vunpack.c.h.b16 %v879
    %v1009 = vunpack.c.l.b16 %v880
    %v1010 = vunpack.c.h.b16 %v880
    %v1011 = vunpack.c.l.b16 %v881
    %v1012 = vunpack.c.h.b16 %v881
    %v1013 = vunpack.c.l.b16 %v882
    %v1014 = vunpack.c.h.b16 %v882
    %v1015 = vunpack.c.l.b16 %v883
    %v1016 = vunpack.c.h.b16 %v883
    %v1017 = vunpack.c.l.b16 %v884
    %v1018 = vunpack.c.h.b16 %v884
    %v1019 = vunpack.c.l.b16 %v885
    %v1020 = vunpack.c.h.b16 %v885
    %v1021 = vunpack.c.l.b16 %v886
    %v1022 = vunpack.c.h.b16 %v886
    %v1023 = vunpack.c.l.b16 %v887
    %v1024 = vunpack.c.h.b16 %v887
    %v1025 = vunpack.c.l.b16 %v888
    %v1026 = vunpack.c.h.b16 %v888
    %v1027 = vunpack.c.l.b16 %v889
    %v1028 = vunpack.c.h.b16 %v889
    %v1029 = vunpack.c.l.b16 %v890
    %v1030 = vunpack.c.h.b16 %v890
    %v1031 = vunpack.c.l.b16 %v891
    %v1032 = vunpack.c.h.b16 %v891
    %v1033 = vunpack.c.l.b16 %v892
    %v1034 = vunpack.c.h.b16 %v892
    %v1035 = vunpack.c.l.b16 %v893
    %v1036 = vunpack.c.h.b16 %v893
    %v1037 = vunpack.c.l.b16 %v894
    %v1038 = vunpack.c.h.b16 %v894
    %v1039 = vpack.c.b16 %v945, %v943
    %v1040 = vpack.c.b16 %v946, %v944
    %v1041 = vpack.c.b16 %v949, %v947
    %v1042 = vpack.c.b16 %v950, %v948
    %v1043 = vpack.c.b16 %v953, %v951
    %v1044 = vpack.c.b16 %v954, %v952
    %v1045 = vpack.c.b16 %v957, %v955
    %v1046 = vpack.c.b16 %v958, %v956
    %v1047 = vpack.c.b16 %v961, %v959
    %v1048 = vpack.c.b16 %v962, %v960
    %v1049 = vpack.c.b16 %v965, %v963
    %v1050 = vpack.c.b16 %v966, %v964
    %v1051 = vpack.c.b16 %v969, %v967
    %v1052 = vpack.c.b16 %v970, %v968
    %v1053 = vpack.c.b16 %v973, %v971
    %v1054 = vpack.c.b16 %v974, %v972
    %v1055 = vpack.c.b16 %v977, %v975
    %v1056 = vpack.c.b16 %v978, %v976
    %v1057 = vpack.c.b16 %v981, %v979
    %v1058 = vpack.c.b16 %v982, %v980
    %v1059 = vpack.c.b16 %v985, %v983
    %v1060 = vpack.c.b16 %v986, %v984
    %v1061 = vpack.c.b16 %v989, %v987
    %v1062 = vpack.c.b16 %v990, %v988
    %v1063 = vpack.c.b16 %v993, %v991
    %v1064 = vpack.c.b16 %v994, %v992
    %v1065 = vpack.c.b16 %v997, %v995
    %v1066 = vpack.c.b16 %v998, %v996
    %v1067 = vpack.c.b16 %v1001, %v999
    %v1068 = vpack.c.b16 %v1002, %v1000
    %v1069 = vpack.c.b16 %v1005, %v1003
    %v1070 = vpack.c.b16 %v1006, %v1004
    %v1071 = vpack.c.b16 %v1009, %v1007
    %v1072 = vpack.c.b16 %v1010, %v1008
    %v1073 = vpack.c.b16 %v1013, %v1011
    %v1074 = vpack.c.b16 %v1014, %v1012
    %v1075 = vpack.c.b16 %v1017, %v1015
    %v1076 = vpack.c.b16 %v1018, %v1016
    %v1077 = vpack.c.b16 %v1021, %v1019
    %v1078 = vpack.c.b16 %v1022, %v1020
    %v1079 = vpack.c.b16 %v1025, %v1023
    %v1080 = vpack.c.b16 %v1026, %v1024
    %v1081 = vpack.c.b16 %v1029, %v1027
    %v1082 = vpack.c.b16 %v1030, %v1028
    %v1083 = vpack.c.b16 %v1033, %v1031
    %v1084 = vpack.c.b16 %v1034, %v1032
    %v1085 = vpack.c.b16 %v1037, %v1035
    %v1086 = vpack.c.b16 %v1038, %v1036
    %1135 = vmatprep.subr.bf16.mxu0 %v1040
    %1136 = vmatpush1.bf16.msra.mxu0 %v1039
    %1137 = vmatprep.subr.bf16.mxu0 %v1042
    %1138 = vmatpush1.bf16.msra.mxu0 %v1041
    %1139 = vmatprep.subr.bf16.mxu0 %v1044
    %1140 = vmatpush1.bf16.msra.mxu0 %v1043
    %1141 = vmatprep.subr.bf16.mxu0 %v1046
    %1142 = vmatpush1.bf16.msra.mxu0 %v1045
    %1143 = vmatprep.subr.bf16.mxu0 %v1048
    %1144 = vmatpush1.bf16.msra.mxu0 %v1047
    %1145 = vmatprep.subr.bf16.mxu0 %v1050
    %1146 = vmatpush1.bf16.msra.mxu0 %v1049
    %1147 = vmatprep.subr.bf16.mxu0 %v1052
    %1148 = vmatpush1.bf16.msra.mxu0 %v1051
    %1149 = vmatprep.subr.bf16.mxu0 %v1054
    %1150 = vmatpush1.bf16.msra.mxu0 %v1053
    %1151 = vmatprep.subr.bf16.mxu0 %v1056
    %1152 = vmatpush1.bf16.msra.mxu0 %v1055
    %1153 = vmatprep.subr.bf16.mxu0 %v1058
    %1154 = vmatpush1.bf16.msra.mxu0 %v1057
    %1155 = vmatprep.subr.bf16.mxu0 %v1060
    %1156 = vmatpush1.bf16.msra.mxu0 %v1059
    %1157 = vmatprep.subr.bf16.mxu0 %v1062
    %1158 = vmatpush1.bf16.msra.mxu0 %v1061
    %1159 = vmatprep.subr.bf16.mxu0 %v1064
    %1160 = vmatpush1.bf16.msra.mxu0 %v1063
    %1161 = vmatprep.subr.bf16.mxu0 %v1066
    %1162 = vmatpush1.bf16.msra.mxu0 %v1065
    %1163 = vmatprep.subr.bf16.mxu0 %v1068
    %1164 = vmatpush1.bf16.msra.mxu0 %v1067
    %1165 = vmatprep.subr.bf16.mxu0 %v1070
    %1166 = vmatpush1.bf16.msra.mxu0 %v1069
    %1167 = vmatprep.mubr.bf16.mxu0 %v844
    %1168 = vmatmul.mubr.bf16.gmra.mrb[0].mxu0 %v842
    %v1169 = vpop.f32.mrb[0].mxu0
    %v1170 = vadd.f32 0.0, %v1169
    %v1171 = vpop.f32.mrb[0].mxu0
    %v1172 = vpop.f32.mrb[0].mxu0
    %v1173 = vadd.f32 0.0, %v1172
    %v1174 = vpop.f32.mrb[0].mxu0
    %1175 = vmatprep.mubr.bf16.mxu0 %v845
    %1176 = vmatmul.mubr.bf16.gmra.mrb[0].mxu0 %v843
    %v1177 = vpop.f32.mrb[0].mxu0
    %v1178 = vadd.f32 0.0, %v1177
    %v1179 = vpop.f32.mrb[0].mxu0
    %v1180 = vpop.f32.mrb[0].mxu0
    %v1181 = vpop.f32.mrb[0].mxu0
    %v1182 = vadd.f32 0.0, %v1181
    %1183 = vdwg.mxu0
    %1184 = vmatprep.subr.bf16.mxu0 %v1072
    %1185 = vmatpush1.bf16.msra.mxu0 %v1071
    %1186 = vmatprep.subr.bf16.mxu0 %v1074
    %1187 = vmatpush1.bf16.msra.mxu0 %v1073
    %1188 = vmatprep.subr.bf16.mxu0 %v1076
    %1189 = vmatpush1.bf16.msra.mxu0 %v1075
    %1190 = vmatprep.subr.bf16.mxu0 %v1078
    %1191 = vmatpush1.bf16.msra.mxu0 %v1077
    %1192 = vmatprep.subr.bf16.mxu0 %v1080
    %1193 = vmatpush1.bf16.msra.mxu0 %v1079
    %1194 = vmatprep.subr.bf16.mxu0 %v1082
    %1195 = vmatpush1.bf16.msra.mxu0 %v1081
    %1196 = vmatprep.subr.bf16.mxu0 %v1084
    %1197 = vmatpush1.bf16.msra.mxu0 %v1083
    %1198 = vmatprep.subr.bf16.mxu0 %v1086
    %1199 = vmatpush1.bf16.msra.mxu0 %v1085
    %1200 = vmatprep.subr.bf16.mxu0 0
    %1201 = vmatpush1.bf16.msra.mxu0 0
    %1202 = vmatprep.subr.bf16.mxu0 0
    %1203 = vmatpush1.bf16.msra.mxu0 0
    %1204 = vmatprep.subr.bf16.mxu0 0
    %1205 = vmatpush1.bf16.msra.mxu0 0
    %1206 = vmatprep.subr.bf16.mxu0 0
    %1207 = vmatpush1.bf16.msra.mxu0 0
    %1208 = vmatprep.subr.bf16.mxu0 0
    %1209 = vmatpush1.bf16.msra.mxu0 0
    %1210 = vmatprep.subr.bf16.mxu0 0
    %1211 = vmatpush1.bf16.msra.mxu0 0
    %1212 = vmatprep.subr.bf16.mxu0 0
    %1213 = vmatpush1.bf16.msra.mxu0 0
    %1214 = vmatprep.subr.bf16.mxu0 0
    %1215 = vmatpush1.bf16.msra.mxu0 0
    %1216 = vmatprep.mubr.bf16.mxu0 0
    %1217 = vmatmul.mubr.bf16.gmra.mrb[0].mxu0 %v775
    %v1218 = vpop.f32.mrb[0].mxu0
    %v1219 = vadd.f32 %v1170, %v1218
    %v1220 = vpop.f32.mrb[0].mxu0
    %v1221 = vpop.f32.mrb[0].mxu0
    %v1222 = vadd.f32 %v1173, %v1221
    %v1223 = vpop.f32.mrb[0].mxu0
    %1224 = vmatprep.mubr.bf16.mxu0 0
    %1225 = vmatmul.mubr.bf16.gmra.mrb[0].mxu0 %v776
    %v1226 = vpop.f32.mrb[0].mxu0
    %v1227 = vadd.f32 %v1178, %v1226
    %v1228 = vpop.f32.mrb[0].mxu0
    %v1229 = vpop.f32.mrb[0].mxu0
    %v1230 = vpop.f32.mrb[0].mxu0
    %v1231 = vadd.f32 %v1182, %v1230
    %1232 = vdwg.mxu0
    %s1233 = scalar_lea.vmem %s5, 1
    %v1234 = vld [vmem:[%s1233] sm:$0x1]
    %s1235 = scalar_lea.vmem %s6, 1
    %v1236 = vld [vmem:[%s1235] sm:$0x1]
    %v1237 = vadd.f32 %v1219, %v1222
    %v1238 = vadd.f32 %v1237, %v1227
    %v1239 = vrot.slane %v1238, 4
    %v1240 = vadd.f32 %v1238, %v1239
    %v1241 = vrot.slane %v1240, 2
    %v1242 = vadd.f32 %v1240, %v1241
    %v1243 = vrot.slane %v1242, 1
    %v1244 = vadd.f32 %v1242, %v1243
    %v1245 = vmul.f32 %v1244, 0.041666668
    %v1246 = vmul.f32 %v1219, %v1219
    %v1247 = vmul.f32 %v1222, %v1222
    %v1248 = vmul.f32 %v1227, %v1227
    %v1249 = vadd.f32 %v1246, %v1247
    %v1250 = vadd.f32 %v1249, %v1248
    %v1251 = vrot.slane %v1250, 4
    %v1252 = vadd.f32 %v1250, %v1251
    %v1253 = vrot.slane %v1252, 2
    %v1254 = vadd.f32 %v1252, %v1253
    %v1255 = vrot.slane %v1254, 1
    %v1256 = vadd.f32 %v1254, %v1255
    %v1257 = vmul.f32 %v1256, 0.041666668
    %v1258 = vmul.f32 %v1245, %v1245
    %v1259 = vsub.f32 %v1257, %v1258
    %v1260 = vmax.f32 %v1259, 0.0
    %v1261 = vsub.f32 %v1219, %v1245
    %v1262 = vsub.f32 %v1222, %v1245
    %v1263 = vsub.f32 %v1227, %v1245
    %v1264 = vadd.f32 %v1260, 1e-05
    %v1265 = vrsqrt.pop %v1264
    %v1266 = vmul.f32 %v1261, %v1265
    %v1267 = vmul.f32 %v1262, %v1265
    %v1268 = vmul.f32 %v1263, %v1265
    %v1270 = vlaneseq
    %v1271 = vshrl.u32 %v1270, 7
    %v1272 = vsub.s32 0, %v1271
    %v1273 = vrot.slane %v1234, %v1272
    %v1275 = vmul.f32 %v1273, %v1266
    %v1276 = vmul.f32 %v1273, %v1267
    %v1277 = vmul.f32 %v1273, %v1268
    %v1279 = vlaneseq
    %v1280 = vshrl.u32 %v1279, 7
    %v1281 = vsub.s32 0, %v1280
    %v1282 = vrot.slane %v1236, %v1281
    %v1284 = vadd.f32 %v1275, %v1282
    %v1285 = vadd.f32 %v1276, %v1282
    %v1286 = vadd.f32 %v1277, %v1282
    %vm1287 = vcmp.ge.f32.partialorder %v1284, 0.0
    %vm1288 = vcmp.ge.f32.partialorder %v1285, 0.0
    %vm1289 = vcmp.ge.f32.partialorder %v1286, 0.0
    %v1290 = vmul.f32 %v1284, 0.01
    %v1291 = vmul.f32 %v1285, 0.01
    %v1292 = vmul.f32 %v1286, 0.01
    %v1293 = vsel %vm1287, %v1284, %v1290
    %v1294 = vsel %vm1288, %v1285, %v1291
    %v1295 = vsel %vm1289, %v1286, %v1292
    %v1296 = vrot.slane %v1231, 4
    %v1297 = vadd.f32 %v1231, %v1296
    %v1298 = vrot.slane %v1297, 2
    %v1299 = vadd.f32 %v1297, %v1298
    %v1300 = vrot.slane %v1299, 1
    %v1301 = vadd.f32 %v1299, %v1300
    %v1302 = vmul.f32 %v1301, 0.125
    %v1303 = vmul.f32 %v1231, %v1231
    %v1304 = vrot.slane %v1303, 4
    %v1305 = vadd.f32 %v1303, %v1304
    %v1306 = vrot.slane %v1305, 2
    %v1307 = vadd.f32 %v1305, %v1306
    %v1308 = vrot.slane %v1307, 1
    %v1309 = vadd.f32 %v1307, %v1308
    %v1310 = vmul.f32 %v1309, 0.125
    %v1311 = vmul.f32 %v1302, %v1302
    %v1312 = vsub.f32 %v1310, %v1311
    %v1313 = vmax.f32 %v1312, 0.0
    %v1314 = vsub.f32 %v1231, %v1302
    %v1315 = vadd.f32 %v1313, 1e-05
    %v1316 = vrsqrt.pop %v1315
    %v1317 = vmul.f32 %v1314, %v1316
    %v1318 = vmul.f32 %v1273, %v1317
    %v1319 = vadd.f32 %v1318, %v1282
    %vm1320 = vcmp.ge.f32.partialorder %v1319, 0.0
    %v1321 = vmul.f32 %v1319, 0.01
    %v1322 = vsel %vm1320, %v1319, %v1321
    %v1323 = vpack.c.bf16 %v1294, %v1293
    %v1324 = vpack.c.bf16 %v1295, %v1295
    %v1325 = vld [vmem:[%s7] sm:$0xf]
    %v1326 = vld [vmem:[%s7 + $0x4] sm:$0xf]
    %v1327 = vld [vmem:[%s7 + $0x8] sm:$0xf]
    %v1328 = vld [vmem:[%s7 + $0xc] sm:$0xf]
    %v1329 = vld [vmem:[%s7 + $0x10] sm:$0xf]
    %v1330 = vld [vmem:[%s7 + $0x14] sm:$0xf]
    %v1331 = vld [vmem:[%s7 + $0x18] sm:$0xf]
    %v1332 = vld [vmem:[%s7 + $0x1c] sm:$0xf]
    %v1333 = vld [vmem:[%s7 + $0x20] sm:$0xf]
    %v1334 = vld [vmem:[%s7 + $0x24] sm:$0xf]
    %v1335 = vld [vmem:[%s7 + $0x28] sm:$0xf]
    %v1336 = vld [vmem:[%s7 + $0x2c] sm:$0xf]
    %v1337 = vld [vmem:[%s7 + $0x30] sm:$0xf]
    %v1338 = vld [vmem:[%s7 + $0x34] sm:$0xf]
    %v1339 = vld [vmem:[%s7 + $0x38] sm:$0xf]
    %v1340 = vld [vmem:[%s7 + $0x3c] sm:$0xf]
    %v1341 = vld [vmem:[%s8] sm:$0x1]
    %v1343 = vlaneseq
    %v1344 = vshrl.u32 %v1343, 7
    %v1345 = vsub.s32 0, %v1344
    %v1346 = vrot.slane %v1341, %v1345
    %v1364 = vunpack.c.l.b16 %v1325
    %v1365 = vunpack.c.l.b16 %v1326
    %v1366 = vunpack.c.l.b16 %v1327
    %v1367 = vunpack.c.l.b16 %v1328
    %v1368 = vunpack.c.l.b16 %v1329
    %v1369 = vunpack.c.l.b16 %v1330
    %v1370 = vunpack.c.l.b16 %v1331
    %v1371 = vunpack.c.l.b16 %v1332
    %v1372 = vunpack.c.l.b16 %v1333
    %v1373 = vunpack.c.l.b16 %v1334
    %v1374 = vunpack.c.l.b16 %v1335
    %v1375 = vunpack.c.l.b16 %v1336
    %v1376 = vunpack.c.l.b16 %v1337
    %v1377 = vunpack.c.l.b16 %v1338
    %v1378 = vunpack.c.l.b16 %v1339
    %v1379 = vunpack.c.l.b16 %v1340
    %v1380 = vpack.c.b16 %v1365, %v1364
    %v1381 = vpack.c.b16 %v1367, %v1366
    %v1382 = vpack.c.b16 %v1369, %v1368
    %v1383 = vpack.c.b16 %v1371, %v1370
    %v1384 = vpack.c.b16 %v1373, %v1372
    %v1385 = vpack.c.b16 %v1375, %v1374
    %v1386 = vpack.c.b16 %v1377, %v1376
    %v1387 = vpack.c.b16 %v1379, %v1378
    %1396 = vmatprep.subr.bf16.mxu0 0
    %1397 = vmatpush1.bf16.msra.mxu0 %v1380
    %1398 = vmatprep.subr.bf16.mxu0 0
    %1399 = vmatpush1.bf16.msra.mxu0 %v1381
    %1400 = vmatprep.subr.bf16.mxu0 0
    %1401 = vmatpush1.bf16.msra.mxu0 %v1382
    %1402 = vmatprep.subr.bf16.mxu0 0
    %1403 = vmatpush1.bf16.msra.mxu0 %v1383
    %1404 = vmatprep.subr.bf16.mxu0 0
    %1405 = vmatpush1.bf16.msra.mxu0 %v1384
    %1406 = vmatprep.subr.bf16.mxu0 0
    %1407 = vmatpush1.bf16.msra.mxu0 %v1385
    %1408 = vmatprep.subr.bf16.mxu0 0
    %1409 = vmatpush1.bf16.msra.mxu0 %v1386
    %1410 = vmatprep.subr.bf16.mxu0 0
    %1411 = vmatpush1.bf16.msra.mxu0 %v1387
    %1412 = vmatprep.subr.bf16.mxu0 0
    %1413 = vmatpush1.bf16.msra.mxu0 0
    %1414 = vmatprep.subr.bf16.mxu0 0
    %1415 = vmatpush1.bf16.msra.mxu0 0
    %1416 = vmatprep.subr.bf16.mxu0 0
    %1417 = vmatpush1.bf16.msra.mxu0 0
    %1418 = vmatprep.subr.bf16.mxu0 0
    %1419 = vmatpush1.bf16.msra.mxu0 0
    %1420 = vmatprep.subr.bf16.mxu0 0
    %1421 = vmatpush1.bf16.msra.mxu0 0
    %1422 = vmatprep.subr.bf16.mxu0 0
    %1423 = vmatpush1.bf16.msra.mxu0 0
    %1424 = vmatprep.subr.bf16.mxu0 0
    %1425 = vmatpush1.bf16.msra.mxu0 0
    %1426 = vmatprep.subr.bf16.mxu0 0
    %1427 = vmatpush1.bf16.msra.mxu0 0
    %1428 = vmatprep.mubr.bf16.mxu0 0
    %1429 = vmatmul.mubr.bf16.gmra.mrb[0].mxu0 %v1323
    %v1430 = vpop.f32.mrb[0].mxu0
    %v1431 = vadd.f32 %v1346, %v1430
    %v1432 = vpop.f32.mrb[0].mxu0
    %v1433 = vpop.f32.mrb[0].mxu0
    %v1434 = vadd.f32 %v1346, %v1433
    %v1435 = vpop.f32.mrb[0].mxu0
    %1436 = vmatprep.mubr.bf16.mxu0 0
    %1437 = vmatmul.mubr.bf16.gmra.mrb[0].mxu0 %v1324
    %v1438 = vpop.f32.mrb[0].mxu0
    %v1439 = vadd.f32 %v1346, %v1438
    %v1440 = vpop.f32.mrb[0].mxu0
    %v1441 = vpop.f32.mrb[0].mxu0
    %v1442 = vpop.f32.mrb[0].mxu0
    %1443 = vdwg.mxu0
    %1444 = vst [vmem:[#allocation5] sm:$0xff] %v1293
    %1445 = vst [vmem:[#allocation5 + $0x8] sm:$0xff] %v1294
    %1446 = vst [vmem:[#allocation5 + $0x10] sm:$0xff] %v1295
    %1447 = vst [vmem:[#allocation6] sm:$0xff] %v1322
    %1448 = vst [vmem:[%s11] sm:$0xff] %v1431
    %1449 = vst [vmem:[%s11 + $0x8] sm:$0xff] %v1434
    %1450 = vst [vmem:[%s11 + $0x10] sm:$0xff] %v1439
    // Predicated region
    $region42: #{gnn_model_forward.1} parent=1 // pred_check
      _
    $region43: #{gnn_model_forward.1} parent=1 // pred_check_branch
      %1452 = sbr.rel (0) target = $region45
    $region44: #{gnn_model_forward.1} parent=1 // pred_region
      %s1454 = ssub.s32 384, 384
      %1455 = vsyncadd [#allocation4], %s1454
      %s1456 = sshll.u32 [#allocation5], 4
      %s1457 = int_to_ptr.vmem [resolvable:$true] %s1456
      %1462 = dma.vmem_to_hbm [thread:$0]  %s1457, 384, %s9, [#allocation4], 128, 128, 8
    $region45: #{gnn_model_forward.1} parent=1 // pred_fallthru
      _
    // Predicated region
    $region46: #{gnn_model_forward.1} parent=1 // pred_check
      _
    $region47: #{gnn_model_forward.1} parent=1 // pred_check_branch
      %1464 = sbr.rel (0) target = $region49
    $region48: #{gnn_model_forward.1} parent=1 // pred_region
      %s1466 = ssub.s32 128, 128
      %1467 = vsyncadd [#allocation7], %s1466
      %s1469 = sshll.u32 [#allocation6], 4
      %s1470 = int_to_ptr.vmem [resolvable:$true] %s1469
      %1472 = dma.vmem_to_hbm [thread:$0]  %s1470, 128, %s10, [#allocation7]
    $region49: #{gnn_model_forward.1} parent=1 // pred_fallthru
      _
    // Predicated region
    $region50: #{gnn_model_forward.1} parent=1 // pred_check
      _
    $region51: #{gnn_model_forward.1} parent=1 // pred_check_branch
      %1474 = sbr.rel (0) target = $region53
    $region52: #{gnn_model_forward.1} parent=1 // pred_region
      _
    $region53: #{gnn_model_forward.1} parent=1 // pred_fallthru
      _
    // Predicated region
    $region54: #{gnn_model_forward.1} parent=1 // pred_check
      _
    $region55: #{gnn_model_forward.1} parent=1 // pred_check_branch
      %1476 = sbr.rel (0) target = $region57
    $region56: #{gnn_model_forward.1} parent=1 // pred_region
      %1477 = dma.done [#allocation4], 384
    $region57: #{gnn_model_forward.1} parent=1 // pred_fallthru
      _
    // Predicated region
    $region58: #{gnn_model_forward.1} parent=1 // pred_check
      _
    $region59: #{gnn_model_forward.1} parent=1 // pred_check_branch
      %1479 = sbr.rel (0) target = $region61
    $region60: #{gnn_model_forward.1} parent=1 // pred_region
      %1480 = dma.done [#allocation7], 128
    $region61: #{gnn_model_forward.1} parent=1 // pred_fallthru
      _
    // Predicated region
    $region62: #{gnn_model_forward.1} parent=1 // pred_check
      _
    $region63: #{gnn_model_forward.1} parent=1 // pred_check_branch
      %1482 = sbr.rel (0) target = $region65
    $region64: #{gnn_model_forward.1} parent=1 // pred_region
      _
    $region65: #{gnn_model_forward.1} parent=1 // pred_fallthru
      _
    %1483 = vsyncpa [#allocation3], 1
    %1484 = vsyncpa [#allocation4], 1
    %1485 = vsyncpa [#allocation7], 1

</llo_original>
